<compile_context>
chip_gen: v7x
topology: tpu7x:2x2x1
jax: 0.10.0
libtpu: 0.0.40
codegen_flags: <defaults>
</compile_context>

<pallas_src>
import functools

import jax
import jax.numpy as jnp
from jax.experimental import pallas as pl
from jax.experimental.pallas import tpu as pltpu

_VMEM = pltpu.MemorySpace.VMEM
# > 32 MiB scoped default (v6e feedback) while leaving headroom under v7x's
# 64 MiB physical VMEM.  Re-derive per-chip for production sizes.
_VMEM_LIMIT = 48 * 1024 * 1024


def _vmem_specs(n):
    return [pl.BlockSpec(memory_space=_VMEM) for _ in range(n)]


# ----------------------------------------------------------------------------
# Kernel 1: node-branch encoder (node_mu GCN over S samples + node_logv GCN)
# ----------------------------------------------------------------------------
def _node_encoder_kernel(adj_ref, x_ref, noise_ref, wn_ref, wx_ref, wv_ref,
                         bias_ref, out_ref, support_ref, *, S, O, N):
    f32 = jnp.float32
    x = x_ref[...]                                                      # (N, F)
    # sample-invariant part of the noised support, computed once (not S times)
    x_wx = jnp.dot(x, wx_ref[...], preferred_element_type=f32)         # (N, O)
    # all S tiny (contraction dim = noise_dim) noise projections in ONE tall
    # matmul -> amortizes MXU pipeline fill instead of S separate dots
    noise_proj = jnp.dot(noise_ref[...], wn_ref[...],
                         preferred_element_type=f32)                   # (S*N, O)
    # build the lane-dense support slab slice-by-slice in a VMEM scratch
    # (no jnp.concatenate -> no S+1 simultaneously-live copies + shuffle copy)
    for s in range(S):                                                  # S small
        support_ref[:, s * O:(s + 1) * O] = (
            noise_proj[s * N:(s + 1) * N, :] + x_wx)
    support_ref[:, S * O:] = jnp.dot(x, wv_ref[...],
                                     preferred_element_type=f32)       # logv head
    # one adj matmul + fused bias for all samples and the logv head
    out_ref[...] = jnp.dot(adj_ref[...], support_ref[...],
                           preferred_element_type=f32) + bias_ref[...]


def node_encoder(adj, x, noise_flat, w_noise, w_x, w_v, bias_cat, *, S, O):
    N, Fdim = x.shape
    nd = w_noise.shape[0]
    flops = 2 * (2 * N * Fdim * O + S * N * nd * O + N * N * (S + 1) * O)
    bytes_accessed = 4 * (adj.size + x.size + noise_flat.size + w_noise.size +
                          w_x.size + w_v.size + bias_cat.size + N * (S + 1) * O)
    return pl.pallas_call(
        functools.partial(_node_encoder_kernel, S=S, O=O, N=N),
        out_shape=jax.ShapeDtypeStruct((N, (S + 1) * O), jnp.float32),
        in_specs=_vmem_specs(7),
        out_specs=pl.BlockSpec(memory_space=_VMEM),
        scratch_shapes=[pltpu.VMEM((N, (S + 1) * O), jnp.float32)],
        compiler_params=pltpu.CompilerParams(vmem_limit_bytes=_VMEM_LIMIT),
        cost_estimate=pl.CostEstimate(flops=flops, transcendentals=0,
                                      bytes_accessed=bytes_accessed),
    )(adj, x, noise_flat, w_noise, w_x, w_v, bias_cat)


# ----------------------------------------------------------------------------
# Kernel 2: attribute-branch encoder (attr_mu MLP over S samples + attr_logv MLP)
# ----------------------------------------------------------------------------
def _attr_encoder_kernel(xt_ref, noise_ref, w1n_ref, w1x_ref, b1_ref, w2_ref,
                         b2_ref, w1v_ref, b1v_ref, w2v_ref, b2v_ref,
                         out_ref, h_ref, *, S, O, F):
    f32 = jnp.float32
    xt = xt_ref[...]                                                    # (F, N)
    # sample-invariant first-layer term, computed once
    xt_w1x = jnp.dot(xt, w1x_ref[...], preferred_element_type=f32)     # (F, H)
    # all S noise projections in ONE tall matmul
    noise_h = jnp.dot(noise_ref[...], w1n_ref[...],
                      preferred_element_type=f32)                      # (S*F, H)
    b1 = b1_ref[...]
    for s in range(S):                                                  # S small
        h_ref[F * s:F * (s + 1), :] = jnp.maximum(
            noise_h[F * s:F * (s + 1), :] + xt_w1x + b1, 0.0)          # fused ReLU
    # single tall second-layer matmul over all S samples, bias fused
    mu_flat = (jnp.dot(h_ref[...], w2_ref[...], preferred_element_type=f32)
               + b2_ref[...])                                           # (S*F, O)
    for s in range(S):
        out_ref[:, s * O:(s + 1) * O] = mu_flat[F * s:F * (s + 1), :]
    # logv MLP branch (shares the call; intermediate never leaves VMEM)
    hv = jnp.maximum(jnp.dot(xt, w1v_ref[...], preferred_element_type=f32)
                     + b1v_ref[...], 0.0)
    out_ref[:, S * O:] = (jnp.dot(hv, w2v_ref[...], preferred_element_type=f32)
                          + b2v_ref[...])


def attr_encoder(xt, noise_flat, w1n, w1x, b1, w2, b2, w1v, b1v, w2v, b2v, *, S, O):
    Fdim, N = xt.shape
    nd = w1n.shape[0]
    H = w1x.shape[1]
    flops = 2 * (2 * Fdim * N * H + S * (Fdim * nd * H + Fdim * H * O)
                 + Fdim * H * O)
    bytes_accessed = 4 * (xt.size + noise_flat.size + w1n.size + w1x.size +
                          b1.size + w2.size + b2.size + w1v.size + b1v.size +
                          w2v.size + b2v.size + Fdim * (S + 1) * O)
    return pl.pallas_call(
        functools.partial(_attr_encoder_kernel, S=S, O=O, F=Fdim),
        out_shape=jax.ShapeDtypeStruct((Fdim, (S + 1) * O), jnp.float32),
        in_specs=_vmem_specs(11),
        out_specs=pl.BlockSpec(memory_space=_VMEM),
        scratch_shapes=[pltpu.VMEM((S * Fdim, H), jnp.float32)],
        compiler_params=pltpu.CompilerParams(vmem_limit_bytes=_VMEM_LIMIT),
        cost_estimate=pl.CostEstimate(flops=flops, transcendentals=0,
                                      bytes_accessed=bytes_accessed),
    )(xt, noise_flat, w1n, w1x, b1, w2, b2, w1v, b1v, w2v, b2v)


# ----------------------------------------------------------------------------
# Kernel 3: decoder, gridded over K (one grid step per importance sample)
# ----------------------------------------------------------------------------
def _decoder_kernel(adj_ref, x_ref, zu_ref, za_ref, wtop_ref, wbot_ref,
                    bdec_ref, out_ref, *, N, Fdim):
    f32 = jnp.float32
    x = x_ref[...]                                                      # (N, F)
    # L1 row-normalize x (torch F.normalize(p=1), eps=1e-12); tiny VPU work
    weights = x / jnp.maximum(jnp.sum(jnp.abs(x), axis=1, keepdims=True), 1e-12)
    z_u = zu_ref[...]                                                   # (N, O)
    z_a = za_ref[...]                                                   # (F, O)
    # z_u @ z_u^T on the MXU (contraction on axis 1, no materialized transpose)
    logits_node = jax.lax.dot_general(z_u, z_u, (((1,), (1,)), ((), ())),
                                      preferred_element_type=f32)      # (N, N)
    fine = jnp.dot(weights, z_a, preferred_element_type=f32)           # (N, O)
    # split decoder weight: [z_u | fine] @ W == z_u @ W_top + fine @ W_bot
    support = (jnp.dot(z_u, wtop_ref[...], preferred_element_type=f32)
               + jnp.dot(fine, wbot_ref[...], preferred_element_type=f32))  # (N,F)
    logits_attr = (jnp.dot(adj_ref[...], support, preferred_element_type=f32)
                   + bdec_ref[...])
    # packed output block: [logits_node | logits_attr] -> one wide store slab
    out_ref[:, :N] = logits_node
    out_ref[:, N:] = logits_attr


def decoder_call(adj, x, zu_slab, za_slab, w_top, w_bot, b_dec, *, K, O):
    N, Fdim = x.shape
    W = N + Fdim
    flops = 2 * K * (N * O * N + N * Fdim * O + 2 * N * O * Fdim + N * N * Fdim)
    bytes_accessed = 4 * (K * (adj.size + x.size + w_top.size + w_bot.size +
                               b_dec.size) + zu_slab.size + za_slab.size +
                          K * N * W)
    return pl.pallas_call(
        functools.partial(_decoder_kernel, N=N, Fdim=Fdim),
        out_shape=jax.ShapeDtypeStruct((N, K * W), jnp.float32),
        grid=(K,),
        in_specs=[
            pl.BlockSpec((N, N), lambda k: (0, 0)),        # adj (shared)
            pl.BlockSpec((N, Fdim), lambda k: (0, 0)),     # x   (shared)
            pl.BlockSpec((N, O), lambda k: (0, k)),        # z_u sample k
            pl.BlockSpec((Fdim, O), lambda k: (0, k)),     # z_a sample k
            pl.BlockSpec((O, Fdim), lambda k: (0, 0)),     # W_top
            pl.BlockSpec((O, Fdim), lambda k: (0, 0)),     # W_bot
            pl.BlockSpec((1, Fdim), lambda k: (0, 0)),     # decoder bias
        ],
        out_specs=pl.BlockSpec((N, W), lambda k: (0, k)),
        compiler_params=pltpu.CompilerParams(
            dimension_semantics=("parallel",),             # 2 TCs on v7x
            vmem_limit_bytes=_VMEM_LIMIT),
        cost_estimate=pl.CostEstimate(flops=flops, transcendentals=0,
                                      bytes_accessed=bytes_accessed),
    )(adj, x, zu_slab, za_slab, w_top, w_bot, b_dec)


# ----------------------------------------------------------------------------
# Parameter init (deterministic, xavier-uniform weights / zero biases)
# ----------------------------------------------------------------------------
def xavier_uniform(key, shape):
    fan_in, fan_out = shape
    limit = (6.0 / (fan_in + fan_out)) ** 0.5
    return jax.random.uniform(key, shape, jnp.float32, -limit, limit)


def init_params(key, num_nodes, input_dim, num_hidden, out_dim, noise_dim):
    ks = jax.random.split(key, 8)
    # encoder_layers = decoder_layers = 1 => GCN hid_dim is unused.
    return {
        "node_mu_nn": (xavier_uniform(ks[0], (noise_dim + input_dim, out_dim)),
                       jnp.zeros((out_dim,), jnp.float32)),
        "node_var_nn": (xavier_uniform(ks[1], (input_dim, out_dim)),
                        jnp.zeros((out_dim,), jnp.float32)),
        "attr_mu_nn": (xavier_uniform(ks[2], (noise_dim + num_nodes, num_hidden)),
                       jnp.zeros((num_hidden,), jnp.float32),
                       xavier_uniform(ks[3], (num_hidden, out_dim)),
                       jnp.zeros((out_dim,), jnp.float32)),
        "attr_var_nn": (xavier_uniform(ks[4], (num_nodes, num_hidden)),
                        jnp.zeros((num_hidden,), jnp.float32),
                        xavier_uniform(ks[5], (num_hidden, out_dim)),
                        jnp.zeros((out_dim,), jnp.float32)),
        "decoder": (xavier_uniform(ks[6], (2 * out_dim, input_dim)),
                    jnp.zeros((input_dim,), jnp.float32)),
    }


# ----------------------------------------------------------------------------
# GraphCIM forward (encode + decode)
# ----------------------------------------------------------------------------
def graphcim_forward(params, adj, x, key, *, K=1, J=1, noise_dim=5):
    N, Fdim = x.shape
    S = K + J
    k_nnoise, k_anoise, k_nz, k_az = jax.random.split(key, 4)

    # ---------------- encode: node branch (one fused Pallas call) ----------------
    W_mu, b_mu = params["node_mu_nn"]                   # W_mu: (nd + F, O)
    W_v, b_v = params["node_var_nn"]                    # W_v : (F, O)
    O = W_mu.shape[1]
    Wn_noise, Wn_x = W_mu[:noise_dim], W_mu[noise_dim:]     # tiny one-time slices
    # TODO(synk): generate Bernoulli/normal noise in-kernel via pltpu.prng_* to
    # remove these HBM round trips; kept in the wrapper for robustness.
    node_noise = jax.random.bernoulli(
        k_nnoise, 0.5, (S * N, noise_dim)).astype(jnp.float32)
    node_bias = jnp.concatenate([jnp.tile(b_mu, S), b_v]).reshape(1, (S + 1) * O)
    node_slab = node_encoder(adj, x, node_noise, Wn_noise, Wn_x, W_v, node_bias,
                             S=S, O=O)
    node_mu = node_slab[:, :S * O].reshape(N, S, O)     # contiguous reshape
    node_logv = node_slab[:, S * O:]                    # (N, O)

    node_mu_iw = node_mu[:, :K, :]
    node_mu_star = node_mu[:, K:, :]
    node_mu_iw_vec = jnp.mean(node_mu_iw, axis=1)
    node_logv_iw = jnp.broadcast_to(node_logv[:, None, :], (N, K, O))
    node_sigma_iw1 = jnp.exp(0.5 * node_logv_iw)
    merged_node_sigma = jnp.broadcast_to(node_sigma_iw1[:, :, None, :], (N, K, J + 1, O))
    node_z_samples_iw = node_mu_iw + node_sigma_iw1 * jax.random.normal(
        k_nz, node_mu_iw.shape, jnp.float32)
    merged_node_z_samples = jnp.broadcast_to(
        node_z_samples_iw[:, :, None, :], (N, K, J + 1, O))
    node_mu_star1 = jnp.broadcast_to(node_mu_star[:, None, :, :], (N, K, J, O))
    merged_node_mu = jnp.concatenate([node_mu_star1, node_mu_iw[:, :, None, :]], axis=2)

    # ---------------- encode: attribute branch (one fused Pallas call) -----------
    W1, b1, W2, b2 = params["attr_mu_nn"]               # W1 : (nd + N, H)
    W1v, b1v, W2v, b2v = params["attr_var_nn"]          # W1v: (N, H)
    W1_noise, W1_x = W1[:noise_dim], W1[noise_dim:]
    xt = x.T   # single tiny (F,N) transpose, never broadcast/concat over samples
    attr_noise = jax.random.bernoulli(
        k_anoise, 0.5, (S * Fdim, noise_dim)).astype(jnp.float32)
    attr_slab = attr_encoder(xt, attr_noise, W1_noise, W1_x, b1.reshape(1, -1),
                             W2, b2.reshape(1, -1), W1v, b1v.reshape(1, -1),
                             W2v, b2v.reshape(1, -1), S=S, O=O)
    attr_mu = attr_slab[:, :S * O].reshape(Fdim, S, O)
    attr_logv = attr_slab[:, S * O:]                    # (F, O)

    attr_mu_iw = attr_mu[:, :K, :]
    attr_mu_star = attr_mu[:, K:, :]
    attr_mu_iw_vec = jnp.mean(attr_mu_iw, axis=1)
    attr_logv_iw = jnp.broadcast_to(attr_logv[:, None, :], (Fdim, K, O))
    attr_sigma_iw1 = jnp.exp(0.5 * attr_logv_iw)
    merged_attr_sigma = jnp.broadcast_to(attr_sigma_iw1[:, :, None, :], (Fdim, K, J + 1, O))
    attr_z_samples_iw = attr_mu_iw + attr_sigma_iw1 * jax.random.normal(
        k_az, attr_mu_iw.shape, jnp.float32)
    merged_attr_z_samples = jnp.broadcast_to(
        attr_z_samples_iw[:, :, None, :], (Fdim, K, J + 1, O))
    attr_mu_star1 = jnp.broadcast_to(attr_mu_star[:, None, :, :], (Fdim, K, J, O))
    merged_attr_mu = jnp.concatenate([attr_mu_star1, attr_mu_iw[:, :, None, :]], axis=2)

    # ---------------- decode (one Pallas call, gridded over K) -------------------
    W_dec, b_dec = params["decoder"]
    W_top, W_bot = W_dec[:O], W_dec[O:]                 # pre-split in wrapper
    zu_slab = node_z_samples_iw.reshape(N, K * O)       # contiguous reshape, free
    za_slab = attr_z_samples_iw.reshape(Fdim, K * O)
    packed = decoder_call(adj, x, zu_slab, za_slab, W_top, W_bot,
                          b_dec.reshape(1, -1), K=K, O=O)
    packed = packed.reshape(N, K, N + Fdim)
    reconstruct_node_logits = packed[:, :, :N].transpose(0, 2, 1)       # (N, N, K)
    reconstruct_attr_logits = packed[:, :, N:].transpose(0, 2, 1)       # (N, F, K)

    return (merged_node_mu, merged_node_sigma, merged_node_z_samples, node_logv_iw,
            node_z_samples_iw, merged_attr_mu, merged_attr_sigma, merged_attr_z_samples,
            attr_logv_iw, attr_z_samples_iw, reconstruct_node_logits,
            reconstruct_attr_logits, node_mu_iw_vec, attr_mu_iw_vec)


# ----------------------------------------------------------------------------
if __name__ == "__main__":
    num_nodes, input_dim = 16, 8
    num_hidden, out_dim, noise_dim, K, J = 32, 32, 5, 1, 1

    root = jax.random.PRNGKey(0)
    k_param, k_x, k_adj, k_fwd = jax.random.split(root, 4)

    params = init_params(k_param, num_nodes, input_dim, num_hidden, out_dim, noise_dim)

    # node features
    x = jax.random.normal(k_x, (num_nodes, input_dim), jnp.float32)
    # symmetric adjacency with self-loops, D^-1/2 A D^-1/2 normalized
    a = (jax.random.uniform(k_adj, (num_nodes, num_nodes)) < 0.3).astype(jnp.float32)
    a = jnp.clip(a + a.T + jnp.eye(num_nodes, dtype=jnp.float32), 0.0, 1.0)
    d_inv_sqrt = 1.0 / jnp.sqrt(jnp.sum(a, axis=1))
    adj = a * d_inv_sqrt[:, None] * d_inv_sqrt[None, :]

    fwd = jax.jit(functools.partial(graphcim_forward, K=K, J=J, noise_dim=noise_dim))
    outs = fwd(params, adj, x, k_fwd)
    jax.block_until_ready(outs)

    expected = [
        (num_nodes, K, J + 1, out_dim), (num_nodes, K, J + 1, out_dim),
        (num_nodes, K, J + 1, out_dim), (num_nodes, K, out_dim),
        (num_nodes, K, out_dim),
        (input_dim, K, J + 1, out_dim), (input_dim, K, J + 1, out_dim),
        (input_dim, K, J + 1, out_dim), (input_dim, K, out_dim),
        (input_dim, K, out_dim),
        (num_nodes, num_nodes, K), (num_nodes, input_dim, K),
        (num_nodes, out_dim), (input_dim, out_dim),
    ]
    for o, e in zip(outs, expected):
        assert o.shape == e, (o.shape, e)
        assert bool(jnp.all(jnp.isfinite(o)))

    print("KERNEL_OK")
</pallas_src>

<mosaic_0001>
module attributes {stable_mosaic.version = 11 : i64} {
  func.func @_node_encoder_kernel(%arg0: memref<16x16xf32, #tpu.memory_space<vmem>>, %arg1: memref<16x8xf32, #tpu.memory_space<vmem>>, %arg2: memref<32x5xf32, #tpu.memory_space<vmem>>, %arg3: memref<5x32xf32, #tpu.memory_space<vmem>>, %arg4: memref<8x32xf32, #tpu.memory_space<vmem>>, %arg5: memref<8x32xf32, #tpu.memory_space<vmem>>, %arg6: memref<1x96xf32, #tpu.memory_space<vmem>>, %arg7: memref<16x96xf32, #tpu.memory_space<vmem>>, %arg8: memref<16x96xf32, #tpu.memory_space<vmem>>) attributes {dimension_semantics = [], scalar_prefetch = 0 : i64, scratch_operands = 1 : i64, tpu.core_type = #tpu.core_type<tc>} {
    %c0 = arith.constant 0 : index
    %c0_0 = arith.constant 0 : index
    %0 = vector.load %arg1[%c0, %c0_0] : memref<16x8xf32, #tpu.memory_space<vmem>>, vector<16x8xf32>
    %c0_1 = arith.constant 0 : index
    %c0_2 = arith.constant 0 : index
    %1 = vector.load %arg4[%c0_1, %c0_2] : memref<8x32xf32, #tpu.memory_space<vmem>>, vector<8x32xf32>
    %cst = arith.constant dense<0.000000e+00> : vector<16x32xf32>
    %2 = tpu.matmul %0, %1, %cst {dimension_numbers = #tpu.dot_dimension_numbers<[1], [0], [0], [1], [0, 0, 1, 1], [], []>} : vector<16x8xf32>, vector<8x32xf32>, vector<16x32xf32> -> vector<16x32xf32>
    %c0_3 = arith.constant 0 : index
    %c0_4 = arith.constant 0 : index
    %3 = vector.load %arg2[%c0_3, %c0_4] : memref<32x5xf32, #tpu.memory_space<vmem>>, vector<32x5xf32>
    %c0_5 = arith.constant 0 : index
    %c0_6 = arith.constant 0 : index
    %4 = vector.load %arg3[%c0_5, %c0_6] : memref<5x32xf32, #tpu.memory_space<vmem>>, vector<5x32xf32>
    %cst_7 = arith.constant dense<0.000000e+00> : vector<32x32xf32>
    %5 = tpu.matmul %3, %4, %cst_7 {dimension_numbers = #tpu.dot_dimension_numbers<[1], [0], [0], [1], [0, 0, 1, 1], [], []>} : vector<32x5xf32>, vector<5x32xf32>, vector<32x32xf32> -> vector<32x32xf32>
    %6 = vector.extract_strided_slice %5 {offsets = [0, 0], sizes = [16, 32], strides = [1, 1]} : vector<32x32xf32> to vector<16x32xf32>
    %7 = arith.addf %6, %2 : vector<16x32xf32>
    %c0_8 = arith.constant 0 : index
    %c0_9 = arith.constant 0 : index
    %8 = vector.load %arg8[%c0_8, %c0_9] : memref<16x96xf32, #tpu.memory_space<vmem>>, vector<16x32xf32>
    tpu.vector_store %arg8[%c0_8, %c0_9], %7 {strides = array<i32>} : memref<16x96xf32, #tpu.memory_space<vmem>>, vector<16x32xf32>,
    %9 = vector.extract_strided_slice %5 {offsets = [16, 0], sizes = [16, 32], strides = [1, 1]} : vector<32x32xf32> to vector<16x32xf32>
    %10 = arith.addf %9, %2 : vector<16x32xf32>
    %c0_10 = arith.constant 0 : index
    %c32 = arith.constant 32 : index
    %11 = vector.load %arg8[%c0_10, %c32] : memref<16x96xf32, #tpu.memory_space<vmem>>, vector<16x32xf32>
    tpu.vector_store %arg8[%c0_10, %c32], %10 {strides = array<i32>} : memref<16x96xf32, #tpu.memory_space<vmem>>, vector<16x32xf32>,
    %c0_11 = arith.constant 0 : index
    %c0_12 = arith.constant 0 : index
    %12 = vector.load %arg5[%c0_11, %c0_12] : memref<8x32xf32, #tpu.memory_space<vmem>>, vector<8x32xf32>
    %cst_13 = arith.constant dense<0.000000e+00> : vector<16x32xf32>
    %13 = tpu.matmul %0, %12, %cst_13 {dimension_numbers = #tpu.dot_dimension_numbers<[1], [0], [0], [1], [0, 0, 1, 1], [], []>} : vector<16x8xf32>, vector<8x32xf32>, vector<16x32xf32> -> vector<16x32xf32>
    %c0_14 = arith.constant 0 : index
    %c64 = arith.constant 64 : index
    %14 = vector.load %arg8[%c0_14, %c64] : memref<16x96xf32, #tpu.memory_space<vmem>>, vector<16x32xf32>
    tpu.vector_store %arg8[%c0_14, %c64], %13 {strides = array<i32>} : memref<16x96xf32, #tpu.memory_space<vmem>>, vector<16x32xf32>,
    %c0_15 = arith.constant 0 : index
    %c0_16 = arith.constant 0 : index
    %15 = vector.load %arg0[%c0_15, %c0_16] : memref<16x16xf32, #tpu.memory_space<vmem>>, vector<16x16xf32>
    %c0_17 = arith.constant 0 : index
    %c0_18 = arith.constant 0 : index
    %16 = vector.load %arg8[%c0_17, %c0_18] : memref<16x96xf32, #tpu.memory_space<vmem>>, vector<16x96xf32>
    %cst_19 = arith.constant dense<0.000000e+00> : vector<16x96xf32>
    %17 = tpu.matmul %15, %16, %cst_19 {dimension_numbers = #tpu.dot_dimension_numbers<[1], [0], [0], [1], [0, 0, 1, 1], [], []>} : vector<16x16xf32>, vector<16x96xf32>, vector<16x96xf32> -> vector<16x96xf32>
    %c0_20 = arith.constant 0 : index
    %c0_21 = arith.constant 0 : index
    %18 = vector.load %arg6[%c0_20, %c0_21] : memref<1x96xf32, #tpu.memory_space<vmem>>, vector<1x96xf32>
    %19 = vector.broadcast %18 : vector<1x96xf32> to vector<16x96xf32>
    %20 = arith.addf %17, %19 : vector<16x96xf32>
    %c0_22 = arith.constant 0 : index
    %c0_23 = arith.constant 0 : index
    %21 = vector.load %arg7[%c0_22, %c0_23] : memref<16x96xf32, #tpu.memory_space<vmem>>, vector<16x96xf32>
    tpu.vector_store %arg7[%c0_22, %c0_23], %20 {strides = array<i32>} : memref<16x96xf32, #tpu.memory_space<vmem>>, vector<16x96xf32>,
    return
  }
}

module attributes {stable_mosaic.version = 11 : i64} {
  func.func @_attr_encoder_kernel(%arg0: memref<8x16xf32, #tpu.memory_space<vmem>>, %arg1: memref<16x5xf32, #tpu.memory_space<vmem>>, %arg2: memref<5x32xf32, #tpu.memory_space<vmem>>, %arg3: memref<16x32xf32, #tpu.memory_space<vmem>>, %arg4: memref<1x32xf32, #tpu.memory_space<vmem>>, %arg5: memref<32x32xf32, #tpu.memory_space<vmem>>, %arg6: memref<1x32xf32, #tpu.memory_space<vmem>>, %arg7: memref<16x32xf32, #tpu.memory_space<vmem>>, %arg8: memref<1x32xf32, #tpu.memory_space<vmem>>, %arg9: memref<32x32xf32, #tpu.memory_space<vmem>>, %arg10: memref<1x32xf32, #tpu.memory_space<vmem>>, %arg11: memref<8x96xf32, #tpu.memory_space<vmem>>, %arg12: memref<16x32xf32, #tpu.memory_space<vmem>>) attributes {dimension_semantics = [], scalar_prefetch = 0 : i64, scratch_operands = 1 : i64, tpu.core_type = #tpu.core_type<tc>} {
    %c0 = arith.constant 0 : index
    %c0_0 = arith.constant 0 : index
    %0 = vector.load %arg0[%c0, %c0_0] : memref<8x16xf32, #tpu.memory_space<vmem>>, vector<8x16xf32>
    %c0_1 = arith.constant 0 : index
    %c0_2 = arith.constant 0 : index
    %1 = vector.load %arg3[%c0_1, %c0_2] : memref<16x32xf32, #tpu.memory_space<vmem>>, vector<16x32xf32>
    %cst = arith.constant dense<0.000000e+00> : vector<8x32xf32>
    %2 = tpu.matmul %0, %1, %cst {dimension_numbers = #tpu.dot_dimension_numbers<[1], [0], [0], [1], [0, 0, 1, 1], [], []>} : vector<8x16xf32>, vector<16x32xf32>, vector<8x32xf32> -> vector<8x32xf32>
    %c0_3 = arith.constant 0 : index
    %c0_4 = arith.constant 0 : index
    %3 = vector.load %arg1[%c0_3, %c0_4] : memref<16x5xf32, #tpu.memory_space<vmem>>, vector<16x5xf32>
    %c0_5 = arith.constant 0 : index
    %c0_6 = arith.constant 0 : index
    %4 = vector.load %arg2[%c0_5, %c0_6] : memref<5x32xf32, #tpu.memory_space<vmem>>, vector<5x32xf32>
    %cst_7 = arith.constant dense<0.000000e+00> : vector<16x32xf32>
    %5 = tpu.matmul %3, %4, %cst_7 {dimension_numbers = #tpu.dot_dimension_numbers<[1], [0], [0], [1], [0, 0, 1, 1], [], []>} : vector<16x5xf32>, vector<5x32xf32>, vector<16x32xf32> -> vector<16x32xf32>
    %c0_8 = arith.constant 0 : index
    %c0_9 = arith.constant 0 : index
    %6 = vector.load %arg4[%c0_8, %c0_9] : memref<1x32xf32, #tpu.memory_space<vmem>>, vector<1x32xf32>
    %7 = vector.extract_strided_slice %5 {offsets = [0, 0], sizes = [8, 32], strides = [1, 1]} : vector<16x32xf32> to vector<8x32xf32>
    %8 = arith.addf %7, %2 : vector<8x32xf32>
    %9 = vector.broadcast %6 : vector<1x32xf32> to vector<8x32xf32>
    %10 = arith.addf %8, %9 : vector<8x32xf32>
    %cst_10 = arith.constant 0.000000e+00 : f32
    %11 = vector.broadcast %cst_10 : f32 to vector<8x32xf32>
    %12 = arith.maximumf %10, %11 : vector<8x32xf32>
    %c0_11 = arith.constant 0 : index
    %c0_12 = arith.constant 0 : index
    %13 = vector.load %arg12[%c0_11, %c0_12] : memref<16x32xf32, #tpu.memory_space<vmem>>, vector<8x32xf32>
    tpu.vector_store %arg12[%c0_11, %c0_12], %12 {strides = array<i32>} : memref<16x32xf32, #tpu.memory_space<vmem>>, vector<8x32xf32>,
    %14 = vector.extract_strided_slice %5 {offsets = [8, 0], sizes = [8, 32], strides = [1, 1]} : vector<16x32xf32> to vector<8x32xf32>
    %15 = arith.addf %14, %2 : vector<8x32xf32>
    %16 = vector.broadcast %6 : vector<1x32xf32> to vector<8x32xf32>
    %17 = arith.addf %15, %16 : vector<8x32xf32>
    %cst_13 = arith.constant 0.000000e+00 : f32
    %18 = vector.broadcast %cst_13 : f32 to vector<8x32xf32>
    %19 = arith.maximumf %17, %18 : vector<8x32xf32>
    %c8 = arith.constant 8 : index
    %c0_14 = arith.constant 0 : index
    %20 = vector.load %arg12[%c8, %c0_14] : memref<16x32xf32, #tpu.memory_space<vmem>>, vector<8x32xf32>
    tpu.vector_store %arg12[%c8, %c0_14], %19 {strides = array<i32>} : memref<16x32xf32, #tpu.memory_space<vmem>>, vector<8x32xf32>,
    %c0_15 = arith.constant 0 : index
    %c0_16 = arith.constant 0 : index
    %21 = vector.load %arg12[%c0_15, %c0_16] : memref<16x32xf32, #tpu.memory_space<vmem>>, vector<16x32xf32>
    %c0_17 = arith.constant 0 : index
    %c0_18 = arith.constant 0 : index
    %22 = vector.load %arg5[%c0_17, %c0_18] : memref<32x32xf32, #tpu.memory_space<vmem>>, vector<32x32xf32>
    %cst_19 = arith.constant dense<0.000000e+00> : vector<16x32xf32>
    %23 = tpu.matmul %21, %22, %cst_19 {dimension_numbers = #tpu.dot_dimension_numbers<[1], [0], [0], [1], [0, 0, 1, 1], [], []>} : vector<16x32xf32>, vector<32x32xf32>, vector<16x32xf32> -> vector<16x32xf32>
    %c0_20 = arith.constant 0 : index
    %c0_21 = arith.constant 0 : index
    %24 = vector.load %arg6[%c0_20, %c0_21] : memref<1x32xf32, #tpu.memory_space<vmem>>, vector<1x32xf32>
    %25 = vector.broadcast %24 : vector<1x32xf32> to vector<16x32xf32>
    %26 = arith.addf %23, %25 : vector<16x32xf32>
    %27 = vector.extract_strided_slice %26 {offsets = [0, 0], sizes = [8, 32], strides = [1, 1]} : vector<16x32xf32> to vector<8x32xf32>
    %c0_22 = arith.constant 0 : index
    %c0_23 = arith.constant 0 : index
    %28 = vector.load %arg11[%c0_22, %c0_23] : memref<8x96xf32, #tpu.memory_space<vmem>>, vector<8x32xf32>
    tpu.vector_store %arg11[%c0_22, %c0_23], %27 {strides = array<i32>} : memref<8x96xf32, #tpu.memory_space<vmem>>, vector<8x32xf32>,
    %29 = vector.extract_strided_slice %26 {offsets = [8, 0], sizes = [8, 32], strides = [1, 1]} : vector<16x32xf32> to vector<8x32xf32>
    %c0_24 = arith.constant 0 : index
    %c32 = arith.constant 32 : index
    %30 = vector.load %arg11[%c0_24, %c32] : memref<8x96xf32, #tpu.memory_space<vmem>>, vector<8x32xf32>
    tpu.vector_store %arg11[%c0_24, %c32], %29 {strides = array<i32>} : memref<8x96xf32, #tpu.memory_space<vmem>>, vector<8x32xf32>,
    %c0_25 = arith.constant 0 : index
    %c0_26 = arith.constant 0 : index
    %31 = vector.load %arg7[%c0_25, %c0_26] : memref<16x32xf32, #tpu.memory_space<vmem>>, vector<16x32xf32>
    %cst_27 = arith.constant dense<0.000000e+00> : vector<8x32xf32>
    %32 = tpu.matmul %0, %31, %cst_27 {dimension_numbers = #tpu.dot_dimension_numbers<[1], [0], [0], [1], [0, 0, 1, 1], [], []>} : vector<8x16xf32>, vector<16x32xf32>, vector<8x32xf32> -> vector<8x32xf32>
    %c0_28 = arith.constant 0 : index
    %c0_29 = arith.constant 0 : index
    %33 = vector.load %arg8[%c0_28, %c0_29] : memref<1x32xf32, #tpu.memory_space<vmem>>, vector<1x32xf32>
    %34 = vector.broadcast %33 : vector<1x32xf32> to vector<8x32xf32>
    %35 = arith.addf %32, %34 : vector<8x32xf32>
    %cst_30 = arith.constant 0.000000e+00 : f32
    %36 = vector.broadcast %cst_30 : f32 to vector<8x32xf32>
    %37 = arith.maximumf %35, %36 : vector<8x32xf32>
    %c0_31 = arith.constant 0 : index
    %c0_32 = arith.constant 0 : index
    %38 = vector.load %arg9[%c0_31, %c0_32] : memref<32x32xf32, #tpu.memory_space<vmem>>, vector<32x32xf32>
    %cst_33 = arith.constant dense<0.000000e+00> : vector<8x32xf32>
    %39 = tpu.matmul %37, %38, %cst_33 {dimension_numbers = #tpu.dot_dimension_numbers<[1], [0], [0], [1], [0, 0, 1, 1], [], []>} : vector<8x32xf32>, vector<32x32xf32>, vector<8x32xf32> -> vector<8x32xf32>
    %c0_34 = arith.constant 0 : index
    %c0_35 = arith.constant 0 : index
    %40 = vector.load %arg10[%c0_34, %c0_35] : memref<1x32xf32, #tpu.memory_space<vmem>>, vector<1x32xf32>
    %41 = vector.broadcast %40 : vector<1x32xf32> to vector<8x32xf32>
    %42 = arith.addf %39, %41 : vector<8x32xf32>
    %c0_36 = arith.constant 0 : index
    %c64 = arith.constant 64 : index
    %43 = vector.load %arg11[%c0_36, %c64] : memref<8x96xf32, #tpu.memory_space<vmem>>, vector<8x32xf32>
    tpu.vector_store %arg11[%c0_36, %c64], %42 {strides = array<i32>} : memref<8x96xf32, #tpu.memory_space<vmem>>, vector<8x32xf32>,
    return
  }
}

module attributes {stable_mosaic.version = 11 : i64} {
  func.func @_decoder_kernel(%arg0: i32, %arg1: memref<16x16xf32, #tpu.memory_space<vmem>>, %arg2: memref<16x8xf32, #tpu.memory_space<vmem>>, %arg3: memref<16x32xf32, #tpu.memory_space<vmem>>, %arg4: memref<8x32xf32, #tpu.memory_space<vmem>>, %arg5: memref<32x8xf32, #tpu.memory_space<vmem>>, %arg6: memref<32x8xf32, #tpu.memory_space<vmem>>, %arg7: memref<1x8xf32, #tpu.memory_space<vmem>>, %arg8: memref<16x24xf32, #tpu.memory_space<vmem>>) attributes {dimension_semantics = [#tpu.dimension_semantics<parallel>], iteration_bounds = array<i64: 1>, scalar_prefetch = 0 : i64, scratch_operands = 0 : i64, tpu.core_type = #tpu.core_type<tc>, window_params = [{pipeline_mode = #tpu.pipeline_mode<synchronous>, transform_indices = @transform_0, window_bounds = array<i64: 16, 16>}, {pipeline_mode = #tpu.pipeline_mode<synchronous>, transform_indices = @transform_1, window_bounds = array<i64: 16, 8>}, {transform_indices = @transform_2, window_bounds = array<i64: 16, 32>}, {transform_indices = @transform_3, window_bounds = array<i64: 8, 32>}, {pipeline_mode = #tpu.pipeline_mode<synchronous>, transform_indices = @transform_4, window_bounds = array<i64: 32, 8>}, {pipeline_mode = #tpu.pipeline_mode<synchronous>, transform_indices = @transform_5, window_bounds = array<i64: 32, 8>}, {pipeline_mode = #tpu.pipeline_mode<synchronous>, transform_indices = @transform_6, window_bounds = array<i64: 1, 8>}, {transform_indices = @transform_7, window_bounds = array<i64: 16, 24>}]} {
    %c0 = arith.constant 0 : index
    %c0_0 = arith.constant 0 : index
    %0 = vector.load %arg2[%c0, %c0_0] : memref<16x8xf32, #tpu.memory_space<vmem>>, vector<16x8xf32>
    %1 = math.absf %0 : vector<16x8xf32>
    %cst = arith.constant dense<0.000000e+00> : vector<16xf32>
    %2 = vector.multi_reduction <add>, %1, %cst [1] : vector<16x8xf32> to vector<16xf32>
    %3 = vector.shape_cast %2 : vector<16xf32> to vector<16x1xf32>
    %cst_1 = arith.constant 9.99999996E-13 : f32
    %4 = vector.broadcast %cst_1 : f32 to vector<16x1xf32>
    %5 = arith.maximumf %3, %4 : vector<16x1xf32>
    %6 = vector.broadcast %5 : vector<16x1xf32> to vector<16x8xf32>
    %7 = arith.divf %0, %6 : vector<16x8xf32>
    %c0_2 = arith.constant 0 : index
    %c0_3 = arith.constant 0 : index
    %8 = vector.load %arg3[%c0_2, %c0_3] : memref<16x32xf32, #tpu.memory_space<vmem>>, vector<16x32xf32>
    %c0_4 = arith.constant 0 : index
    %c0_5 = arith.constant 0 : index
    %9 = vector.load %arg4[%c0_4, %c0_5] : memref<8x32xf32, #tpu.memory_space<vmem>>, vector<8x32xf32>
    %cst_6 = arith.constant dense<0.000000e+00> : vector<16x16xf32>
    %10 = tpu.matmul %8, %8, %cst_6 {dimension_numbers = #tpu.dot_dimension_numbers<[1], [1], [0], [0], [0, 0, 1, 0], [], []>} : vector<16x32xf32>, vector<16x32xf32>, vector<16x16xf32> -> vector<16x16xf32>
    %cst_7 = arith.constant dense<0.000000e+00> : vector<16x32xf32>
    %11 = tpu.matmul %7, %9, %cst_7 {dimension_numbers = #tpu.dot_dimension_numbers<[1], [0], [0], [1], [0, 0, 1, 1], [], []>} : vector<16x8xf32>, vector<8x32xf32>, vector<16x32xf32> -> vector<16x32xf32>
    %c0_8 = arith.constant 0 : index
    %c0_9 = arith.constant 0 : index
    %12 = vector.load %arg5[%c0_8, %c0_9] : memref<32x8xf32, #tpu.memory_space<vmem>>, vector<32x8xf32>
    %cst_10 = arith.constant dense<0.000000e+00> : vector<16x8xf32>
    %13 = tpu.matmul %8, %12, %cst_10 {dimension_numbers = #tpu.dot_dimension_numbers<[1], [0], [0], [1], [0, 0, 1, 1], [], []>} : vector<16x32xf32>, vector<32x8xf32>, vector<16x8xf32> -> vector<16x8xf32>
    %c0_11 = arith.constant 0 : index
    %c0_12 = arith.constant 0 : index
    %14 = vector.load %arg6[%c0_11, %c0_12] : memref<32x8xf32, #tpu.memory_space<vmem>>, vector<32x8xf32>
    %cst_13 = arith.constant dense<0.000000e+00> : vector<16x8xf32>
    %15 = tpu.matmul %11, %14, %cst_13 {dimension_numbers = #tpu.dot_dimension_numbers<[1], [0], [0], [1], [0, 0, 1, 1], [], []>} : vector<16x32xf32>, vector<32x8xf32>, vector<16x8xf32> -> vector<16x8xf32>
    %16 = arith.addf %13, %15 : vector<16x8xf32>
    %c0_14 = arith.constant 0 : index
    %c0_15 = arith.constant 0 : index
    %17 = vector.load %arg1[%c0_14, %c0_15] : memref<16x16xf32, #tpu.memory_space<vmem>>, vector<16x16xf32>
    %cst_16 = arith.constant dense<0.000000e+00> : vector<16x8xf32>
    %18 = tpu.matmul %17, %16, %cst_16 {dimension_numbers = #tpu.dot_dimension_numbers<[1], [0], [0], [1], [0, 0, 1, 1], [], []>} : vector<16x16xf32>, vector<16x8xf32>, vector<16x8xf32> -> vector<16x8xf32>
    %c0_17 = arith.constant 0 : index
    %c0_18 = arith.constant 0 : index
    %19 = vector.load %arg7[%c0_17, %c0_18] : memref<1x8xf32, #tpu.memory_space<vmem>>, vector<1x8xf32>
    %20 = vector.broadcast %19 : vector<1x8xf32> to vector<16x8xf32>
    %21 = arith.addf %18, %20 : vector<16x8xf32>
    %c0_19 = arith.constant 0 : index
    %c0_20 = arith.constant 0 : index
    %22 = vector.load %arg8[%c0_19, %c0_20] : memref<16x24xf32, #tpu.memory_space<vmem>>, vector<16x16xf32>
    tpu.vector_store %arg8[%c0_19, %c0_20], %10 {strides = array<i32>} : memref<16x24xf32, #tpu.memory_space<vmem>>, vector<16x16xf32>,
    %c0_21 = arith.constant 0 : index
    %c16 = arith.constant 16 : index
    %23 = vector.load %arg8[%c0_21, %c16] : memref<16x24xf32, #tpu.memory_space<vmem>>, vector<16x8xf32>
    tpu.vector_store %arg8[%c0_21, %c16], %21 {strides = array<i32>} : memref<16x24xf32, #tpu.memory_space<vmem>>, vector<16x8xf32>,
    return
  }
  func.func @transform_0(%arg0: i32) -> (i32, i32) {
    %c0_i32 = arith.constant 0 : i32
    %c0_i32_0 = arith.constant 0 : i32
    %c0_i32_1 = arith.constant 0 : i32
    return %c0_i32, %c0_i32_0 : i32, i32
  }
  func.func @transform_1(%arg0: i32) -> (i32, i32) {
    %c0_i32 = arith.constant 0 : i32
    %c0_i32_0 = arith.constant 0 : i32
    %c0_i32_1 = arith.constant 0 : i32
    return %c0_i32, %c0_i32_0 : i32, i32
  }
  func.func @transform_2(%arg0: i32) -> (i32, i32) {
    %c0_i32 = arith.constant 0 : i32
    %c0_i32_0 = arith.constant 0 : i32
    return %c0_i32, %arg0 : i32, i32
  }
  func.func @transform_3(%arg0: i32) -> (i32, i32) {
    %c0_i32 = arith.constant 0 : i32
    %c0_i32_0 = arith.constant 0 : i32
    return %c0_i32, %arg0 : i32, i32
  }
  func.func @transform_4(%arg0: i32) -> (i32, i32) {
    %c0_i32 = arith.constant 0 : i32
    %c0_i32_0 = arith.constant 0 : i32
    %c0_i32_1 = arith.constant 0 : i32
    return %c0_i32, %c0_i32_0 : i32, i32
  }
  func.func @transform_5(%arg0: i32) -> (i32, i32) {
    %c0_i32 = arith.constant 0 : i32
    %c0_i32_0 = arith.constant 0 : i32
    %c0_i32_1 = arith.constant 0 : i32
    return %c0_i32, %c0_i32_0 : i32, i32
  }
  func.func @transform_6(%arg0: i32) -> (i32, i32) {
    %c0_i32 = arith.constant 0 : i32
    %c0_i32_0 = arith.constant 0 : i32
    %c0_i32_1 = arith.constant 0 : i32
    return %c0_i32, %c0_i32_0 : i32, i32
  }
  func.func @transform_7(%arg0: i32) -> (i32, i32) {
    %c0_i32 = arith.constant 0 : i32
    %c0_i32_0 = arith.constant 0 : i32
    return %c0_i32, %arg0 : i32, i32
  }
}

</mosaic_0001>

<llo_original>
// kernel: tile.8
$region0: #{tile.8}
  #allocation0 [shape = 's32[1]{0}', space=sflag, size = 0x4, scoped, tag = 'scoped memory for tile.8']
  %s0 = inlined_call_operand.vmem [shape: f32[32], index: 0, kind: input, shape index: {}]
  %s1 = inlined_call_operand.vmem [shape: f32[2,32], index: 1, kind: output, shape index: {}]
  // Predicated region
  $region2: #{tile.8} parent=0 // pred_check
    _
  $region3: #{tile.8} parent=0 // pred_check_branch
    %3 = sbr.rel (0) target = $region5
  $region4: #{tile.8} parent=0 // pred_region
    _
  $region5: #{tile.8} parent=0 // pred_fallthru
    _
  %v4 = vld [vmem:[%s0] ss:$0 sm:$0xff]
  %5 = vst [vmem:[%s1] sm:$0x3] %v4

// kernel: tile.9
$region0: #{tile.9}
  %s0 = inlined_call_operand.vmem [shape: f32[2,32], index: 0, kind: input, shape index: {}]
  %s1 = inlined_call_operand.vmem [shape: f32[64], index: 1, kind: output, shape index: {}]
  $region1: #{tile.9} parent=0
    #allocation0 [shape = 'u8[4096]{0}', space=vmem, size = 0x1000, scoped, tag = 'scoped mem for output reshape']
    #allocation1 [shape = 'u8[4096]{0}', space=vmem, size = 0x1000, scoped, tag = 'scoped mem for input reshape']
    %s3 = sshllo.u32 0, 2
    %v4 = vld [vmem:[%s0] sm:%s3]
    %5 = vst [vmem:[#allocation1] sm:%s3] %v4
    %v6 = vld [vmem:[#allocation1] sm:$0x1]
    %vm7 = vcmask 261120
    %8 = vst.msk [vmem:[#allocation0] sm:$0x1] %vm7, %v6
    %s9 = scalar_lea.vmem [#allocation1], 1
    %v10 = vld [vmem:[%s9] sm:$0x1]
    %11 = vrot.lane.b32.xlu0 %v10, 32
    %v12 = vpop.permute.xlu0 %11
    %vm13 = vcmask 523520
    %14 = vst.msk [vmem:[#allocation0] sm:$0x1] %vm13, %v12
    %s16 = sshllo.u32 0, 1
    %v18 = vld [vmem:[#allocation0] sm:%s16]
    %s19 = sshllo.u32 0, 1
    %20 = vst [vmem:[%s1] sm:%s19] %v18

// kernel: graphcim_forward.6
$region0: #{graphcim_forward.6}
  #allocation0 [shape = 'u32[]', space=smem, size = 0x4, offset = 0x4, fixed_abs, tag = 'smem constant byte address 0x4 - core index']
  #allocation1 [shape = 'u32[144,128]{1,0:T(1,128)}', space=vmem, size = 0x12000, scoped, tag = 'internal scratch']
  #allocation2 [shape = 'f32[16,32]{1,0:T(8,128)}', space=vmem, size = 0x2000, scoped, tag = 'scratch operand']
  %s0 = inlined_call_operand.vmem [shape: f32[8,16], index: 0, kind: input, shape index: {}]
  %s1 = inlined_call_operand.vmem [shape: f32[16,5], index: 1, kind: input, shape index: {}]
  %s2 = inlined_call_operand.vmem [shape: f32[5,32], index: 2, kind: input, shape index: {}]
  %s3 = inlined_call_operand.vmem [shape: f32[16,32], index: 3, kind: input, shape index: {}]
  %s4 = inlined_call_operand.vmem [shape: f32[1,32], index: 4, kind: input, shape index: {}]
  %s5 = inlined_call_operand.vmem [shape: f32[32,32], index: 5, kind: input, shape index: {}]
  %s6 = inlined_call_operand.vmem [shape: f32[1,32], index: 6, kind: input, shape index: {}]
  %s7 = inlined_call_operand.vmem [shape: f32[16,32], index: 7, kind: input, shape index: {}]
  %s8 = inlined_call_operand.vmem [shape: f32[1,32], index: 8, kind: input, shape index: {}]
  %s9 = inlined_call_operand.vmem [shape: f32[32,32], index: 9, kind: input, shape index: {}]
  %s10 = inlined_call_operand.vmem [shape: f32[1,32], index: 10, kind: input, shape index: {}]
  %s11 = inlined_call_operand.vmem [shape: f32[8,96], index: 11, kind: output, shape index: {}]
  %s12 = sld [smem:[#allocation0]]
  $region54: #{graphcim_forward.6} parent=0
    _
  %s14 = ssub.s32 1, %s12
  %s15 = scalar_select 0, %s14, %s12
  // Predicated region
  $region2: #{graphcim_forward.6} parent=0 // pred_check
    _
  $region3: #{graphcim_forward.6} parent=0 // pred_check_branch
    %17 = sbr.rel (0) target = $region5
  $region4: #{graphcim_forward.6} parent=0 // pred_region
    _
  $region5: #{graphcim_forward.6} parent=0 // pred_fallthru
    _
  // Predicated region
  $region6: #{graphcim_forward.6} parent=0 // pred_check
    _
  $region7: #{graphcim_forward.6} parent=0 // pred_check_branch
    %19 = sbr.rel (0) target = $region9
  $region8: #{graphcim_forward.6} parent=0 // pred_region
    _
  $region9: #{graphcim_forward.6} parent=0 // pred_fallthru
    _
  // Predicated region
  $region10: #{graphcim_forward.6} parent=0 // pred_check
    _
  $region11: #{graphcim_forward.6} parent=0 // pred_check_branch
    %21 = sbr.rel (0) target = $region13
  $region12: #{graphcim_forward.6} parent=0 // pred_region
    _
  $region13: #{graphcim_forward.6} parent=0 // pred_fallthru
    _
  // Predicated region
  $region14: #{graphcim_forward.6} parent=0 // pred_check
    _
  $region15: #{graphcim_forward.6} parent=0 // pred_check_branch
    %23 = sbr.rel (0) target = $region17
  $region16: #{graphcim_forward.6} parent=0 // pred_region
    _
  $region17: #{graphcim_forward.6} parent=0 // pred_fallthru
    _
  // Predicated region
  $region18: #{graphcim_forward.6} parent=0 // pred_check
    _
  $region19: #{graphcim_forward.6} parent=0 // pred_check_branch
    %25 = sbr.rel (0) target = $region21
  $region20: #{graphcim_forward.6} parent=0 // pred_region
    _
  $region21: #{graphcim_forward.6} parent=0 // pred_fallthru
    _
  // Predicated region
  $region22: #{graphcim_forward.6} parent=0 // pred_check
    _
  $region23: #{graphcim_forward.6} parent=0 // pred_check_branch
    %27 = sbr.rel (0) target = $region25
  $region24: #{graphcim_forward.6} parent=0 // pred_region
    _
  $region25: #{graphcim_forward.6} parent=0 // pred_fallthru
    _
  // Predicated region
  $region26: #{graphcim_forward.6} parent=0 // pred_check
    _
  $region27: #{graphcim_forward.6} parent=0 // pred_check_branch
    %29 = sbr.rel (0) target = $region29
  $region28: #{graphcim_forward.6} parent=0 // pred_region
    _
  $region29: #{graphcim_forward.6} parent=0 // pred_fallthru
    _
  // Predicated region
  $region30: #{graphcim_forward.6} parent=0 // pred_check
    _
  $region31: #{graphcim_forward.6} parent=0 // pred_check_branch
    %31 = sbr.rel (0) target = $region33
  $region32: #{graphcim_forward.6} parent=0 // pred_region
    _
  $region33: #{graphcim_forward.6} parent=0 // pred_fallthru
    _
  // Predicated region
  $region34: #{graphcim_forward.6} parent=0 // pred_check
    _
  $region35: #{graphcim_forward.6} parent=0 // pred_check_branch
    %33 = sbr.rel (0) target = $region37
  $region36: #{graphcim_forward.6} parent=0 // pred_region
    _
  $region37: #{graphcim_forward.6} parent=0 // pred_fallthru
    _
  // Predicated region
  $region38: #{graphcim_forward.6} parent=0 // pred_check
    _
  $region39: #{graphcim_forward.6} parent=0 // pred_check_branch
    %35 = sbr.rel (0) target = $region41
  $region40: #{graphcim_forward.6} parent=0 // pred_region
    _
  $region41: #{graphcim_forward.6} parent=0 // pred_fallthru
    _
  // Predicated region
  $region42: #{graphcim_forward.6} parent=0 // pred_check
    _
  $region43: #{graphcim_forward.6} parent=0 // pred_check_branch
    %37 = sbr.rel (0) target = $region45
  $region44: #{graphcim_forward.6} parent=0 // pred_region
    _
  $region45: #{graphcim_forward.6} parent=0 // pred_fallthru
    _
  %v38 = vld [vmem:[%s0] sm:$0xff]
  %v39 = vld [vmem:[%s3] sm:$0xff]
  %v40 = vld [vmem:[%s3 + $0x8] sm:$0xff]
  %vm41 = vcmask 130048
  %v43 = vsel %vm41, %v38, 0
  %45 = vmatprep.subr.mxu0 0.0
  %46 = vmatpush1.msra.mxu0 %v39
  %47 = vmatprep.subr.mxu0 0.0
  %48 = vmatpush1.msra.mxu0 %v40
  %49 = vmatprep.subr.mxu0 0.0
  %50 = vmatpush1.msra.mxu0 0.0
  %51 = vmatprep.subr.mxu0 0.0
  %52 = vmatpush1.msra.mxu0 0.0
  %53 = vmatprep.subr.mxu0 0.0
  %54 = vmatpush1.msra.mxu0 0.0
  %55 = vmatprep.subr.mxu0 0.0
  %56 = vmatpush1.msra.mxu0 0.0
  %57 = vmatprep.subr.mxu0 0.0
  %58 = vmatpush1.msra.mxu0 0.0
  %59 = vmatprep.subr.mxu0 0.0
  %60 = vmatpush1.msra.mxu0 0.0
  %61 = vmatprep.subr.mxu0 0.0
  %62 = vmatpush1.msra.mxu0 0.0
  %63 = vmatprep.subr.mxu0 0.0
  %64 = vmatpush1.msra.mxu0 0.0
  %65 = vmatprep.subr.mxu0 0.0
  %66 = vmatpush1.msra.mxu0 0.0
  %67 = vmatprep.subr.mxu0 0.0
  %68 = vmatpush1.msra.mxu0 0.0
  %69 = vmatprep.subr.mxu0 0.0
  %70 = vmatpush1.msra.mxu0 0.0
  %71 = vmatprep.subr.mxu0 0.0
  %72 = vmatpush1.msra.mxu0 0.0
  %73 = vmatprep.subr.mxu0 0.0
  %74 = vmatpush1.msra.mxu0 0.0
  %75 = vmatprep.subr.mxu0 0.0
  %76 = vmatpush1.msra.mxu0 0.0
  %77 = vmatprep.subr.mxu0 0.0
  %78 = vmatpush1.msra.mxu0 0.0
  %79 = vmatprep.subr.mxu0 0.0
  %80 = vmatpush1.msra.mxu0 0.0
  %81 = vmatprep.subr.mxu0 0.0
  %82 = vmatpush1.msra.mxu0 0.0
  %83 = vmatprep.subr.mxu0 0.0
  %84 = vmatpush1.msra.mxu0 0.0
  %85 = vmatprep.subr.mxu0 0.0
  %86 = vmatpush1.msra.mxu0 0.0
  %87 = vmatprep.subr.mxu0 0.0
  %88 = vmatpush1.msra.mxu0 0.0
  %89 = vmatprep.subr.mxu0 0.0
  %90 = vmatpush1.msra.mxu0 0.0
  %91 = vmatprep.subr.mxu0 0.0
  %92 = vmatpush1.msra.mxu0 0.0
  %93 = vmatprep.subr.mxu0 0.0
  %94 = vmatpush1.msra.mxu0 0.0
  %95 = vmatprep.subr.mxu0 0.0
  %96 = vmatpush1.msra.mxu0 0.0
  %97 = vmatprep.subr.mxu0 0.0
  %98 = vmatpush1.msra.mxu0 0.0
  %99 = vmatprep.subr.mxu0 0.0
  %100 = vmatpush1.msra.mxu0 0.0
  %101 = vmatprep.subr.mxu0 0.0
  %102 = vmatpush1.msra.mxu0 0.0
  %103 = vmatprep.subr.mxu0 0.0
  %104 = vmatpush1.msra.mxu0 0.0
  %105 = vmatprep.subr.mxu0 0.0
  %106 = vmatpush1.msra.mxu0 0.0
  %107 = vmatprep.subr.mxu0 0.0
  %108 = vmatpush1.msra.mxu0 0.0
  %109 = vmatprep.mubr.f32.mxu0 0.0
  %110 = vmatmul.mubr.f32.gmra.mrb[0].mxu0 %v43
  %v111 = vpop.f32.mrb[0].mxu0
  %v112 = vadd.f32 0.0, %v111
  %v113 = vpop.f32.mrb[0].mxu0
  %114 = vdwg.mxu0
  %v115 = vld [vmem:[%s1] sm:$0xff]
  %v116 = vld [vmem:[%s1 + $0x8] sm:$0xff]
  %v117 = vld [vmem:[%s2] sm:$0x1f]
  %vm118 = vcmask 39936
  %v120 = vsel %vm118, %v115, 0
  %v123 = vsel %vm118, %v116, 0
  %vm125 = vcmask 1044480
  %v127 = vsel %vm125, %v117, 0
  %129 = vmatprep.subr.mxu0 0.0
  %130 = vmatpush1.msra.mxu0 %v127
  %131 = vmatprep.subr.mxu0 0.0
  %132 = vmatpush1.msra.mxu0 0.0
  %133 = vmatprep.subr.mxu0 0.0
  %134 = vmatpush1.msra.mxu0 0.0
  %135 = vmatprep.subr.mxu0 0.0
  %136 = vmatpush1.msra.mxu0 0.0
  %137 = vmatprep.subr.mxu0 0.0
  %138 = vmatpush1.msra.mxu0 0.0
  %139 = vmatprep.subr.mxu0 0.0
  %140 = vmatpush1.msra.mxu0 0.0
  %141 = vmatprep.subr.mxu0 0.0
  %142 = vmatpush1.msra.mxu0 0.0
  %143 = vmatprep.subr.mxu0 0.0
  %144 = vmatpush1.msra.mxu0 0.0
  %145 = vmatprep.subr.mxu0 0.0
  %146 = vmatpush1.msra.mxu0 0.0
  %147 = vmatprep.subr.mxu0 0.0
  %148 = vmatpush1.msra.mxu0 0.0
  %149 = vmatprep.subr.mxu0 0.0
  %150 = vmatpush1.msra.mxu0 0.0
  %151 = vmatprep.subr.mxu0 0.0
  %152 = vmatpush1.msra.mxu0 0.0
  %153 = vmatprep.subr.mxu0 0.0
  %154 = vmatpush1.msra.mxu0 0.0
  %155 = vmatprep.subr.mxu0 0.0
  %156 = vmatpush1.msra.mxu0 0.0
  %157 = vmatprep.subr.mxu0 0.0
  %158 = vmatpush1.msra.mxu0 0.0
  %159 = vmatprep.subr.mxu0 0.0
  %160 = vmatpush1.msra.mxu0 0.0
  %161 = vmatprep.subr.mxu0 0.0
  %162 = vmatpush1.msra.mxu0 0.0
  %163 = vmatprep.subr.mxu0 0.0
  %164 = vmatpush1.msra.mxu0 0.0
  %165 = vmatprep.subr.mxu0 0.0
  %166 = vmatpush1.msra.mxu0 0.0
  %167 = vmatprep.subr.mxu0 0.0
  %168 = vmatpush1.msra.mxu0 0.0
  %169 = vmatprep.subr.mxu0 0.0
  %170 = vmatpush1.msra.mxu0 0.0
  %171 = vmatprep.subr.mxu0 0.0
  %172 = vmatpush1.msra.mxu0 0.0
  %173 = vmatprep.subr.mxu0 0.0
  %174 = vmatpush1.msra.mxu0 0.0
  %175 = vmatprep.subr.mxu0 0.0
  %176 = vmatpush1.msra.mxu0 0.0
  %177 = vmatprep.subr.mxu0 0.0
  %178 = vmatpush1.msra.mxu0 0.0
  %179 = vmatprep.subr.mxu0 0.0
  %180 = vmatpush1.msra.mxu0 0.0
  %181 = vmatprep.subr.mxu0 0.0
  %182 = vmatpush1.msra.mxu0 0.0
  %183 = vmatprep.subr.mxu0 0.0
  %184 = vmatpush1.msra.mxu0 0.0
  %185 = vmatprep.subr.mxu0 0.0
  %186 = vmatpush1.msra.mxu0 0.0
  %187 = vmatprep.subr.mxu0 0.0
  %188 = vmatpush1.msra.mxu0 0.0
  %189 = vmatprep.subr.mxu0 0.0
  %190 = vmatpush1.msra.mxu0 0.0
  %191 = vmatprep.subr.mxu0 0.0
  %192 = vmatpush1.msra.mxu0 0.0
  %193 = vmatprep.mubr.f32.mxu0 0.0
  %194 = vmatmul.mubr.f32.gmra.mrb[0].mxu0 %v120
  %v195 = vpop.f32.mrb[0].mxu0
  %v196 = vadd.f32 0.0, %v195
  %v197 = vpop.f32.mrb[0].mxu0
  %198 = vmatprep.mubr.f32.mxu0 0.0
  %199 = vmatmul.mubr.f32.gmra.mrb[0].mxu0 %v123
  %v200 = vpop.f32.mrb[0].mxu0
  %v201 = vadd.f32 0.0, %v200
  %v202 = vpop.f32.mrb[0].mxu0
  %203 = vdwg.mxu0
  %v204 = vld [vmem:[%s4] sm:$0x1]
  %v205 = vadd.f32 %v196, %v112
  %v207 = vlaneseq
  %v208 = vshrl.u32 %v207, 7
  %v209 = vsub.s32 0, %v208
  %v210 = vrot.slane %v204, %v209
  %v212 = vadd.f32 %v205, %v210
  %v213 = vmax.f32 %v212, 0.0
  %vm214 = vcmask 261120
  %215 = vst.msk [vmem:[#allocation2] sm:$0xff] %vm214, %v213
  %v216 = vadd.f32 %v201, %v112
  %v217 = vadd.f32 %v216, %v210
  %v218 = vmax.f32 %v217, 0.0
  %219 = vst.msk [vmem:[#allocation2 + $0x8] sm:$0xff] %vm214, %v218
  %v220 = vld [vmem:[#allocation2] sm:$0xff]
  %v221 = vld [vmem:[#allocation2 + $0x8] sm:$0xff]
  %v222 = vld [vmem:[%s5] sm:$0xff]
  %v223 = vld [vmem:[%s5 + $0x8] sm:$0xff]
  %v224 = vld [vmem:[%s5 + $0x10] sm:$0xff]
  %v225 = vld [vmem:[%s5 + $0x18] sm:$0xff]
  %v226 = vld [vmem:[%s6] sm:$0x1]
  %v228 = vlaneseq
  %v229 = vshrl.u32 %v228, 7
  %v230 = vsub.s32 0, %v229
  %v231 = vrot.slane %v226, %v230
  %v234 = vsel %vm214, %v220, 0
  %v237 = vsel %vm214, %v221, 0
  %239 = vmatprep.subr.mxu0 0.0
  %240 = vmatpush1.msra.mxu0 %v222
  %241 = vmatprep.subr.mxu0 0.0
  %242 = vmatpush1.msra.mxu0 %v223
  %243 = vmatprep.subr.mxu0 0.0
  %244 = vmatpush1.msra.mxu0 %v224
  %245 = vmatprep.subr.mxu0 0.0
  %246 = vmatpush1.msra.mxu0 %v225
  %247 = vmatprep.subr.mxu0 0.0
  %248 = vmatpush1.msra.mxu0 0.0
  %249 = vmatprep.subr.mxu0 0.0
  %250 = vmatpush1.msra.mxu0 0.0
  %251 = vmatprep.subr.mxu0 0.0
  %252 = vmatpush1.msra.mxu0 0.0
  %253 = vmatprep.subr.mxu0 0.0
  %254 = vmatpush1.msra.mxu0 0.0
  %255 = vmatprep.subr.mxu0 0.0
  %256 = vmatpush1.msra.mxu0 0.0
  %257 = vmatprep.subr.mxu0 0.0
  %258 = vmatpush1.msra.mxu0 0.0
  %259 = vmatprep.subr.mxu0 0.0
  %260 = vmatpush1.msra.mxu0 0.0
  %261 = vmatprep.subr.mxu0 0.0
  %262 = vmatpush1.msra.mxu0 0.0
  %263 = vmatprep.subr.mxu0 0.0
  %264 = vmatpush1.msra.mxu0 0.0
  %265 = vmatprep.subr.mxu0 0.0
  %266 = vmatpush1.msra.mxu0 0.0
  %267 = vmatprep.subr.mxu0 0.0
  %268 = vmatpush1.msra.mxu0 0.0
  %269 = vmatprep.subr.mxu0 0.0
  %270 = vmatpush1.msra.mxu0 0.0
  %271 = vmatprep.subr.mxu0 0.0
  %272 = vmatpush1.msra.mxu0 0.0
  %273 = vmatprep.subr.mxu0 0.0
  %274 = vmatpush1.msra.mxu0 0.0
  %275 = vmatprep.subr.mxu0 0.0
  %276 = vmatpush1.msra.mxu0 0.0
  %277 = vmatprep.subr.mxu0 0.0
  %278 = vmatpush1.msra.mxu0 0.0
  %279 = vmatprep.subr.mxu0 0.0
  %280 = vmatpush1.msra.mxu0 0.0
  %281 = vmatprep.subr.mxu0 0.0
  %282 = vmatpush1.msra.mxu0 0.0
  %283 = vmatprep.subr.mxu0 0.0
  %284 = vmatpush1.msra.mxu0 0.0
  %285 = vmatprep.subr.mxu0 0.0
  %286 = vmatpush1.msra.mxu0 0.0
  %287 = vmatprep.subr.mxu0 0.0
  %288 = vmatpush1.msra.mxu0 0.0
  %289 = vmatprep.subr.mxu0 0.0
  %290 = vmatpush1.msra.mxu0 0.0
  %291 = vmatprep.subr.mxu0 0.0
  %292 = vmatpush1.msra.mxu0 0.0
  %293 = vmatprep.subr.mxu0 0.0
  %294 = vmatpush1.msra.mxu0 0.0
  %295 = vmatprep.subr.mxu0 0.0
  %296 = vmatpush1.msra.mxu0 0.0
  %297 = vmatprep.subr.mxu0 0.0
  %298 = vmatpush1.msra.mxu0 0.0
  %299 = vmatprep.subr.mxu0 0.0
  %300 = vmatpush1.msra.mxu0 0.0
  %301 = vmatprep.subr.mxu0 0.0
  %302 = vmatpush1.msra.mxu0 0.0
  %303 = vmatprep.mubr.f32.mxu0 0.0
  %304 = vmatmul.mubr.f32.gmra.mrb[0].mxu0 %v234
  %v305 = vpop.f32.mrb[0].mxu0
  %v306 = vadd.f32 %v231, %v305
  %v307 = vpop.f32.mrb[0].mxu0
  %308 = vmatprep.mubr.f32.mxu0 0.0
  %309 = vmatmul.mubr.f32.gmra.mrb[0].mxu0 %v237
  %v310 = vpop.f32.mrb[0].mxu0
  %v311 = vadd.f32 %v231, %v310
  %v312 = vpop.f32.mrb[0].mxu0
  %313 = vdwg.mxu0
  %314 = vst.msk [vmem:[%s11] sm:$0xff] %vm214, %v306
  %316 = vrot.lane.b32.xlu0 %v311, 32
  %v317 = vpop.permute.xlu0 %316
  %vm319 = vcmask 523520
  %320 = vst.msk [vmem:[%s11] sm:$0xff] %vm319, %v317
  %v321 = vld [vmem:[%s7] sm:$0xff]
  %v322 = vld [vmem:[%s7 + $0x8] sm:$0xff]
  %v323 = vld [vmem:[%s8] sm:$0x1]
  %v325 = vlaneseq
  %v326 = vshrl.u32 %v325, 7
  %v327 = vsub.s32 0, %v326
  %v328 = vrot.slane %v323, %v327
  %330 = vmatprep.subr.mxu0 0.0
  %331 = vmatpush1.msra.mxu0 %v321
  %332 = vmatprep.subr.mxu0 0.0
  %333 = vmatpush1.msra.mxu0 %v322
  %334 = vmatprep.subr.mxu0 0.0
  %335 = vmatpush1.msra.mxu0 0.0
  %336 = vmatprep.subr.mxu0 0.0
  %337 = vmatpush1.msra.mxu0 0.0
  %338 = vmatprep.subr.mxu0 0.0
  %339 = vmatpush1.msra.mxu0 0.0
  %340 = vmatprep.subr.mxu0 0.0
  %341 = vmatpush1.msra.mxu0 0.0
  %342 = vmatprep.subr.mxu0 0.0
  %343 = vmatpush1.msra.mxu0 0.0
  %344 = vmatprep.subr.mxu0 0.0
  %345 = vmatpush1.msra.mxu0 0.0
  %346 = vmatprep.subr.mxu0 0.0
  %347 = vmatpush1.msra.mxu0 0.0
  %348 = vmatprep.subr.mxu0 0.0
  %349 = vmatpush1.msra.mxu0 0.0
  %350 = vmatprep.subr.mxu0 0.0
  %351 = vmatpush1.msra.mxu0 0.0
  %352 = vmatprep.subr.mxu0 0.0
  %353 = vmatpush1.msra.mxu0 0.0
  %354 = vmatprep.subr.mxu0 0.0
  %355 = vmatpush1.msra.mxu0 0.0
  %356 = vmatprep.subr.mxu0 0.0
  %357 = vmatpush1.msra.mxu0 0.0
  %358 = vmatprep.subr.mxu0 0.0
  %359 = vmatpush1.msra.mxu0 0.0
  %360 = vmatprep.subr.mxu0 0.0
  %361 = vmatpush1.msra.mxu0 0.0
  %362 = vmatprep.subr.mxu0 0.0
  %363 = vmatpush1.msra.mxu0 0.0
  %364 = vmatprep.subr.mxu0 0.0
  %365 = vmatpush1.msra.mxu0 0.0
  %366 = vmatprep.subr.mxu0 0.0
  %367 = vmatpush1.msra.mxu0 0.0
  %368 = vmatprep.subr.mxu0 0.0
  %369 = vmatpush1.msra.mxu0 0.0
  %370 = vmatprep.subr.mxu0 0.0
  %371 = vmatpush1.msra.mxu0 0.0
  %372 = vmatprep.subr.mxu0 0.0
  %373 = vmatpush1.msra.mxu0 0.0
  %374 = vmatprep.subr.mxu0 0.0
  %375 = vmatpush1.msra.mxu0 0.0
  %376 = vmatprep.subr.mxu0 0.0
  %377 = vmatpush1.msra.mxu0 0.0
  %378 = vmatprep.subr.mxu0 0.0
  %379 = vmatpush1.msra.mxu0 0.0
  %380 = vmatprep.subr.mxu0 0.0
  %381 = vmatpush1.msra.mxu0 0.0
  %382 = vmatprep.subr.mxu0 0.0
  %383 = vmatpush1.msra.mxu0 0.0
  %384 = vmatprep.subr.mxu0 0.0
  %385 = vmatpush1.msra.mxu0 0.0
  %386 = vmatprep.subr.mxu0 0.0
  %387 = vmatpush1.msra.mxu0 0.0
  %388 = vmatprep.subr.mxu0 0.0
  %389 = vmatpush1.msra.mxu0 0.0
  %390 = vmatprep.subr.mxu0 0.0
  %391 = vmatpush1.msra.mxu0 0.0
  %392 = vmatprep.subr.mxu0 0.0
  %393 = vmatpush1.msra.mxu0 0.0
  %394 = vmatprep.mubr.f32.mxu0 0.0
  %395 = vmatmul.mubr.f32.gmra.mrb[0].mxu0 %v43
  %v396 = vpop.f32.mrb[0].mxu0
  %v397 = vadd.f32 %v328, %v396
  %v398 = vpop.f32.mrb[0].mxu0
  %399 = vdwg.mxu0
  %v400 = vmax.f32 %v397, 0.0
  %v401 = vld [vmem:[%s9] sm:$0xff]
  %v402 = vld [vmem:[%s9 + $0x8] sm:$0xff]
  %v403 = vld [vmem:[%s9 + $0x10] sm:$0xff]
  %v404 = vld [vmem:[%s9 + $0x18] sm:$0xff]
  %v405 = vld [vmem:[%s10] sm:$0x1]
  %v407 = vlaneseq
  %v408 = vshrl.u32 %v407, 7
  %v409 = vsub.s32 0, %v408
  %v410 = vrot.slane %v405, %v409
  %v413 = vsel %vm214, %v400, 0
  %415 = vmatprep.subr.mxu0 0.0
  %416 = vmatpush1.msra.mxu0 %v401
  %417 = vmatprep.subr.mxu0 0.0
  %418 = vmatpush1.msra.mxu0 %v402
  %419 = vmatprep.subr.mxu0 0.0
  %420 = vmatpush1.msra.mxu0 %v403
  %421 = vmatprep.subr.mxu0 0.0
  %422 = vmatpush1.msra.mxu0 %v404
  %423 = vmatprep.subr.mxu0 0.0
  %424 = vmatpush1.msra.mxu0 0.0
  %425 = vmatprep.subr.mxu0 0.0
  %426 = vmatpush1.msra.mxu0 0.0
  %427 = vmatprep.subr.mxu0 0.0
  %428 = vmatpush1.msra.mxu0 0.0
  %429 = vmatprep.subr.mxu0 0.0
  %430 = vmatpush1.msra.mxu0 0.0
  %431 = vmatprep.subr.mxu0 0.0
  %432 = vmatpush1.msra.mxu0 0.0
  %433 = vmatprep.subr.mxu0 0.0
  %434 = vmatpush1.msra.mxu0 0.0
  %435 = vmatprep.subr.mxu0 0.0
  %436 = vmatpush1.msra.mxu0 0.0
  %437 = vmatprep.subr.mxu0 0.0
  %438 = vmatpush1.msra.mxu0 0.0
  %439 = vmatprep.subr.mxu0 0.0
  %440 = vmatpush1.msra.mxu0 0.0
  %441 = vmatprep.subr.mxu0 0.0
  %442 = vmatpush1.msra.mxu0 0.0
  %443 = vmatprep.subr.mxu0 0.0
  %444 = vmatpush1.msra.mxu0 0.0
  %445 = vmatprep.subr.mxu0 0.0
  %446 = vmatpush1.msra.mxu0 0.0
  %447 = vmatprep.subr.mxu0 0.0
  %448 = vmatpush1.msra.mxu0 0.0
  %449 = vmatprep.subr.mxu0 0.0
  %450 = vmatpush1.msra.mxu0 0.0
  %451 = vmatprep.subr.mxu0 0.0
  %452 = vmatpush1.msra.mxu0 0.0
  %453 = vmatprep.subr.mxu0 0.0
  %454 = vmatpush1.msra.mxu0 0.0
  %455 = vmatprep.subr.mxu0 0.0
  %456 = vmatpush1.msra.mxu0 0.0
  %457 = vmatprep.subr.mxu0 0.0
  %458 = vmatpush1.msra.mxu0 0.0
  %459 = vmatprep.subr.mxu0 0.0
  %460 = vmatpush1.msra.mxu0 0.0
  %461 = vmatprep.subr.mxu0 0.0
  %462 = vmatpush1.msra.mxu0 0.0
  %463 = vmatprep.subr.mxu0 0.0
  %464 = vmatpush1.msra.mxu0 0.0
  %465 = vmatprep.subr.mxu0 0.0
  %466 = vmatpush1.msra.mxu0 0.0
  %467 = vmatprep.subr.mxu0 0.0
  %468 = vmatpush1.msra.mxu0 0.0
  %469 = vmatprep.subr.mxu0 0.0
  %470 = vmatpush1.msra.mxu0 0.0
  %471 = vmatprep.subr.mxu0 0.0
  %472 = vmatpush1.msra.mxu0 0.0
  %473 = vmatprep.subr.mxu0 0.0
  %474 = vmatpush1.msra.mxu0 0.0
  %475 = vmatprep.subr.mxu0 0.0
  %476 = vmatpush1.msra.mxu0 0.0
  %477 = vmatprep.subr.mxu0 0.0
  %478 = vmatpush1.msra.mxu0 0.0
  %479 = vmatprep.mubr.f32.mxu0 0.0
  %480 = vmatmul.mubr.f32.gmra.mrb[0].mxu0 %v413
  %v481 = vpop.f32.mrb[0].mxu0
  %v482 = vadd.f32 %v410, %v481
  %v483 = vpop.f32.mrb[0].mxu0
  %484 = vdwg.mxu0
  %486 = vrot.lane.b32.xlu0 %v482, 64
  %v487 = vpop.permute.xlu0 %486
  %vm489 = vcmask 785920
  %490 = vst.msk [vmem:[%s11] sm:$0xff] %vm489, %v487
  // Predicated region
  $region46: #{graphcim_forward.6} parent=0 // pred_check
    _
  $region47: #{graphcim_forward.6} parent=0 // pred_check_branch
    %492 = sbr.rel (0) target = $region49
  $region48: #{graphcim_forward.6} parent=0 // pred_region
    _
  $region49: #{graphcim_forward.6} parent=0 // pred_fallthru
    _
  // Predicated region
  $region50: #{graphcim_forward.6} parent=0 // pred_check
    _
  $region51: #{graphcim_forward.6} parent=0 // pred_check_branch
    %494 = sbr.rel (0) target = $region53
  $region52: #{graphcim_forward.6} parent=0 // pred_region
    _
  $region53: #{graphcim_forward.6} parent=0 // pred_fallthru
    _

// kernel: graphcim_forward.5
$region0: #{graphcim_forward.5}
  #allocation0 [shape = 'u32[]', space=smem, size = 0x4, offset = 0x4, fixed_abs, tag = 'smem constant byte address 0x4 - core index']
  #allocation1 [shape = 'u32[144,128]{1,0:T(1,128)}', space=vmem, size = 0x12000, scoped, tag = 'internal scratch']
  #allocation2 [shape = 'f32[16,96]{1,0:T(8,128)}', space=vmem, size = 0x2000, scoped, tag = 'scratch operand']
  %s0 = inlined_call_operand.vmem [shape: f32[16,16], index: 0, kind: input, shape index: {}]
  %s1 = inlined_call_operand.vmem [shape: f32[16,8], index: 1, kind: input, shape index: {}]
  %s2 = inlined_call_operand.vmem [shape: f32[32,5], index: 2, kind: input, shape index: {}]
  %s3 = inlined_call_operand.vmem [shape: f32[5,32], index: 3, kind: input, shape index: {}]
  %s4 = inlined_call_operand.vmem [shape: f32[8,32], index: 4, kind: input, shape index: {}]
  %s5 = inlined_call_operand.vmem [shape: f32[8,32], index: 5, kind: input, shape index: {}]
  %s6 = inlined_call_operand.vmem [shape: f32[1,96], index: 6, kind: input, shape index: {}]
  %s7 = inlined_call_operand.vmem [shape: f32[16,96], index: 7, kind: output, shape index: {}]
  %s8 = sld [smem:[#allocation0]]
  $region38: #{graphcim_forward.5} parent=0
    _
  %s10 = ssub.s32 1, %s8
  %s11 = scalar_select 0, %s10, %s8
  // Predicated region
  $region2: #{graphcim_forward.5} parent=0 // pred_check
    _
  $region3: #{graphcim_forward.5} parent=0 // pred_check_branch
    %13 = sbr.rel (0) target = $region5
  $region4: #{graphcim_forward.5} parent=0 // pred_region
    _
  $region5: #{graphcim_forward.5} parent=0 // pred_fallthru
    _
  // Predicated region
  $region6: #{graphcim_forward.5} parent=0 // pred_check
    _
  $region7: #{graphcim_forward.5} parent=0 // pred_check_branch
    %15 = sbr.rel (0) target = $region9
  $region8: #{graphcim_forward.5} parent=0 // pred_region
    _
  $region9: #{graphcim_forward.5} parent=0 // pred_fallthru
    _
  // Predicated region
  $region10: #{graphcim_forward.5} parent=0 // pred_check
    _
  $region11: #{graphcim_forward.5} parent=0 // pred_check_branch
    %17 = sbr.rel (0) target = $region13
  $region12: #{graphcim_forward.5} parent=0 // pred_region
    _
  $region13: #{graphcim_forward.5} parent=0 // pred_fallthru
    _
  // Predicated region
  $region14: #{graphcim_forward.5} parent=0 // pred_check
    _
  $region15: #{graphcim_forward.5} parent=0 // pred_check_branch
    %19 = sbr.rel (0) target = $region17
  $region16: #{graphcim_forward.5} parent=0 // pred_region
    _
  $region17: #{graphcim_forward.5} parent=0 // pred_fallthru
    _
  // Predicated region
  $region18: #{graphcim_forward.5} parent=0 // pred_check
    _
  $region19: #{graphcim_forward.5} parent=0 // pred_check_branch
    %21 = sbr.rel (0) target = $region21
  $region20: #{graphcim_forward.5} parent=0 // pred_region
    _
  $region21: #{graphcim_forward.5} parent=0 // pred_fallthru
    _
  // Predicated region
  $region22: #{graphcim_forward.5} parent=0 // pred_check
    _
  $region23: #{graphcim_forward.5} parent=0 // pred_check_branch
    %23 = sbr.rel (0) target = $region25
  $region24: #{graphcim_forward.5} parent=0 // pred_region
    _
  $region25: #{graphcim_forward.5} parent=0 // pred_fallthru
    _
  // Predicated region
  $region26: #{graphcim_forward.5} parent=0 // pred_check
    _
  $region27: #{graphcim_forward.5} parent=0 // pred_check_branch
    %25 = sbr.rel (0) target = $region29
  $region28: #{graphcim_forward.5} parent=0 // pred_region
    _
  $region29: #{graphcim_forward.5} parent=0 // pred_fallthru
    _
  %v26 = vld [vmem:[%s1] sm:$0xff]
  %v27 = vld [vmem:[%s1 + $0x8] sm:$0xff]
  %v28 = vld [vmem:[%s4] sm:$0xff]
  %vm29 = vcmask 64512
  %v31 = vsel %vm29, %v26, 0
  %v34 = vsel %vm29, %v27, 0
  %36 = vmatprep.subr.mxu0 0.0
  %37 = vmatpush1.msra.mxu0 %v28
  %38 = vmatprep.subr.mxu0 0.0
  %39 = vmatpush1.msra.mxu0 0.0
  %40 = vmatprep.subr.mxu0 0.0
  %41 = vmatpush1.msra.mxu0 0.0
  %42 = vmatprep.subr.mxu0 0.0
  %43 = vmatpush1.msra.mxu0 0.0
  %44 = vmatprep.subr.mxu0 0.0
  %45 = vmatpush1.msra.mxu0 0.0
  %46 = vmatprep.subr.mxu0 0.0
  %47 = vmatpush1.msra.mxu0 0.0
  %48 = vmatprep.subr.mxu0 0.0
  %49 = vmatpush1.msra.mxu0 0.0
  %50 = vmatprep.subr.mxu0 0.0
  %51 = vmatpush1.msra.mxu0 0.0
  %52 = vmatprep.subr.mxu0 0.0
  %53 = vmatpush1.msra.mxu0 0.0
  %54 = vmatprep.subr.mxu0 0.0
  %55 = vmatpush1.msra.mxu0 0.0
  %56 = vmatprep.subr.mxu0 0.0
  %57 = vmatpush1.msra.mxu0 0.0
  %58 = vmatprep.subr.mxu0 0.0
  %59 = vmatpush1.msra.mxu0 0.0
  %60 = vmatprep.subr.mxu0 0.0
  %61 = vmatpush1.msra.mxu0 0.0
  %62 = vmatprep.subr.mxu0 0.0
  %63 = vmatpush1.msra.mxu0 0.0
  %64 = vmatprep.subr.mxu0 0.0
  %65 = vmatpush1.msra.mxu0 0.0
  %66 = vmatprep.subr.mxu0 0.0
  %67 = vmatpush1.msra.mxu0 0.0
  %68 = vmatprep.subr.mxu0 0.0
  %69 = vmatpush1.msra.mxu0 0.0
  %70 = vmatprep.subr.mxu0 0.0
  %71 = vmatpush1.msra.mxu0 0.0
  %72 = vmatprep.subr.mxu0 0.0
  %73 = vmatpush1.msra.mxu0 0.0
  %74 = vmatprep.subr.mxu0 0.0
  %75 = vmatpush1.msra.mxu0 0.0
  %76 = vmatprep.subr.mxu0 0.0
  %77 = vmatpush1.msra.mxu0 0.0
  %78 = vmatprep.subr.mxu0 0.0
  %79 = vmatpush1.msra.mxu0 0.0
  %80 = vmatprep.subr.mxu0 0.0
  %81 = vmatpush1.msra.mxu0 0.0
  %82 = vmatprep.subr.mxu0 0.0
  %83 = vmatpush1.msra.mxu0 0.0
  %84 = vmatprep.subr.mxu0 0.0
  %85 = vmatpush1.msra.mxu0 0.0
  %86 = vmatprep.subr.mxu0 0.0
  %87 = vmatpush1.msra.mxu0 0.0
  %88 = vmatprep.subr.mxu0 0.0
  %89 = vmatpush1.msra.mxu0 0.0
  %90 = vmatprep.subr.mxu0 0.0
  %91 = vmatpush1.msra.mxu0 0.0
  %92 = vmatprep.subr.mxu0 0.0
  %93 = vmatpush1.msra.mxu0 0.0
  %94 = vmatprep.subr.mxu0 0.0
  %95 = vmatpush1.msra.mxu0 0.0
  %96 = vmatprep.subr.mxu0 0.0
  %97 = vmatpush1.msra.mxu0 0.0
  %98 = vmatprep.subr.mxu0 0.0
  %99 = vmatpush1.msra.mxu0 0.0
  %100 = vmatprep.mubr.f32.mxu0 0.0
  %101 = vmatmul.mubr.f32.gmra.mrb[0].mxu0 %v31
  %v102 = vpop.f32.mrb[0].mxu0
  %v103 = vadd.f32 0.0, %v102
  %v104 = vpop.f32.mrb[0].mxu0
  %105 = vmatprep.mubr.f32.mxu0 0.0
  %106 = vmatmul.mubr.f32.gmra.mrb[0].mxu0 %v34
  %v107 = vpop.f32.mrb[0].mxu0
  %v108 = vadd.f32 0.0, %v107
  %v109 = vpop.f32.mrb[0].mxu0
  %110 = vdwg.mxu0
  %v111 = vld [vmem:[%s2] sm:$0xff]
  %v112 = vld [vmem:[%s2 + $0x8] sm:$0xff]
  %v113 = vld [vmem:[%s2 + $0x10] sm:$0xff]
  %v114 = vld [vmem:[%s2 + $0x18] sm:$0xff]
  %v115 = vld [vmem:[%s3] sm:$0x1f]
  %vm116 = vcmask 39936
  %v118 = vsel %vm116, %v111, 0
  %v121 = vsel %vm116, %v112, 0
  %v124 = vsel %vm116, %v113, 0
  %v127 = vsel %vm116, %v114, 0
  %vm129 = vcmask 1044480
  %v131 = vsel %vm129, %v115, 0
  %133 = vmatprep.subr.mxu0 0.0
  %134 = vmatpush1.msra.mxu0 %v131
  %135 = vmatprep.subr.mxu0 0.0
  %136 = vmatpush1.msra.mxu0 0.0
  %137 = vmatprep.subr.mxu0 0.0
  %138 = vmatpush1.msra.mxu0 0.0
  %139 = vmatprep.subr.mxu0 0.0
  %140 = vmatpush1.msra.mxu0 0.0
  %141 = vmatprep.subr.mxu0 0.0
  %142 = vmatpush1.msra.mxu0 0.0
  %143 = vmatprep.subr.mxu0 0.0
  %144 = vmatpush1.msra.mxu0 0.0
  %145 = vmatprep.subr.mxu0 0.0
  %146 = vmatpush1.msra.mxu0 0.0
  %147 = vmatprep.subr.mxu0 0.0
  %148 = vmatpush1.msra.mxu0 0.0
  %149 = vmatprep.subr.mxu0 0.0
  %150 = vmatpush1.msra.mxu0 0.0
  %151 = vmatprep.subr.mxu0 0.0
  %152 = vmatpush1.msra.mxu0 0.0
  %153 = vmatprep.subr.mxu0 0.0
  %154 = vmatpush1.msra.mxu0 0.0
  %155 = vmatprep.subr.mxu0 0.0
  %156 = vmatpush1.msra.mxu0 0.0
  %157 = vmatprep.subr.mxu0 0.0
  %158 = vmatpush1.msra.mxu0 0.0
  %159 = vmatprep.subr.mxu0 0.0
  %160 = vmatpush1.msra.mxu0 0.0
  %161 = vmatprep.subr.mxu0 0.0
  %162 = vmatpush1.msra.mxu0 0.0
  %163 = vmatprep.subr.mxu0 0.0
  %164 = vmatpush1.msra.mxu0 0.0
  %165 = vmatprep.subr.mxu0 0.0
  %166 = vmatpush1.msra.mxu0 0.0
  %167 = vmatprep.subr.mxu0 0.0
  %168 = vmatpush1.msra.mxu0 0.0
  %169 = vmatprep.subr.mxu0 0.0
  %170 = vmatpush1.msra.mxu0 0.0
  %171 = vmatprep.subr.mxu0 0.0
  %172 = vmatpush1.msra.mxu0 0.0
  %173 = vmatprep.subr.mxu0 0.0
  %174 = vmatpush1.msra.mxu0 0.0
  %175 = vmatprep.subr.mxu0 0.0
  %176 = vmatpush1.msra.mxu0 0.0
  %177 = vmatprep.subr.mxu0 0.0
  %178 = vmatpush1.msra.mxu0 0.0
  %179 = vmatprep.subr.mxu0 0.0
  %180 = vmatpush1.msra.mxu0 0.0
  %181 = vmatprep.subr.mxu0 0.0
  %182 = vmatpush1.msra.mxu0 0.0
  %183 = vmatprep.subr.mxu0 0.0
  %184 = vmatpush1.msra.mxu0 0.0
  %185 = vmatprep.subr.mxu0 0.0
  %186 = vmatpush1.msra.mxu0 0.0
  %187 = vmatprep.subr.mxu0 0.0
  %188 = vmatpush1.msra.mxu0 0.0
  %189 = vmatprep.subr.mxu0 0.0
  %190 = vmatpush1.msra.mxu0 0.0
  %191 = vmatprep.subr.mxu0 0.0
  %192 = vmatpush1.msra.mxu0 0.0
  %193 = vmatprep.subr.mxu0 0.0
  %194 = vmatpush1.msra.mxu0 0.0
  %195 = vmatprep.subr.mxu0 0.0
  %196 = vmatpush1.msra.mxu0 0.0
  %197 = vmatprep.mubr.f32.mxu0 0.0
  %198 = vmatmul.mubr.f32.gmra.mrb[0].mxu0 %v118
  %v199 = vpop.f32.mrb[0].mxu0
  %v200 = vadd.f32 0.0, %v199
  %v201 = vpop.f32.mrb[0].mxu0
  %202 = vmatprep.mubr.f32.mxu0 0.0
  %203 = vmatmul.mubr.f32.gmra.mrb[0].mxu0 %v121
  %v204 = vpop.f32.mrb[0].mxu0
  %v205 = vadd.f32 0.0, %v204
  %v206 = vpop.f32.mrb[0].mxu0
  %207 = vmatprep.mubr.f32.mxu0 0.0
  %208 = vmatmul.mubr.f32.gmra.mrb[0].mxu0 %v124
  %v209 = vpop.f32.mrb[0].mxu0
  %v210 = vadd.f32 0.0, %v209
  %v211 = vpop.f32.mrb[0].mxu0
  %212 = vmatprep.mubr.f32.mxu0 0.0
  %213 = vmatmul.mubr.f32.gmra.mrb[0].mxu0 %v127
  %v214 = vpop.f32.mrb[0].mxu0
  %v215 = vadd.f32 0.0, %v214
  %v216 = vpop.f32.mrb[0].mxu0
  %217 = vdwg.mxu0
  %v218 = vadd.f32 %v200, %v103
  %v219 = vadd.f32 %v205, %v108
  %vm220 = vcmask 261120
  %221 = vst.msk [vmem:[#allocation2] sm:$0xff] %vm220, %v218
  %222 = vst.msk [vmem:[#allocation2 + $0x8] sm:$0xff] %vm220, %v219
  %v223 = vadd.f32 %v210, %v103
  %v224 = vadd.f32 %v215, %v108
  %227 = vrot.lane.b32.xlu0 %v223, 32
  %v228 = vpop.permute.xlu0 %227
  %229 = vrot.lane.b32.xlu0 %v224, 32
  %v230 = vpop.permute.xlu0 %229
  %vm233 = vcmask 523520
  %234 = vst.msk [vmem:[#allocation2] sm:$0xff] %vm233, %v228
  %235 = vst.msk [vmem:[#allocation2 + $0x8] sm:$0xff] %vm233, %v230
  %v236 = vld [vmem:[%s5] sm:$0xff]
  %237 = vmatprep.subr.mxu0 0.0
  %238 = vmatpush1.msra.mxu0 %v236
  %239 = vmatprep.subr.mxu0 0.0
  %240 = vmatpush1.msra.mxu0 0.0
  %241 = vmatprep.subr.mxu0 0.0
  %242 = vmatpush1.msra.mxu0 0.0
  %243 = vmatprep.subr.mxu0 0.0
  %244 = vmatpush1.msra.mxu0 0.0
  %245 = vmatprep.subr.mxu0 0.0
  %246 = vmatpush1.msra.mxu0 0.0
  %247 = vmatprep.subr.mxu0 0.0
  %248 = vmatpush1.msra.mxu0 0.0
  %249 = vmatprep.subr.mxu0 0.0
  %250 = vmatpush1.msra.mxu0 0.0
  %251 = vmatprep.subr.mxu0 0.0
  %252 = vmatpush1.msra.mxu0 0.0
  %253 = vmatprep.subr.mxu0 0.0
  %254 = vmatpush1.msra.mxu0 0.0
  %255 = vmatprep.subr.mxu0 0.0
  %256 = vmatpush1.msra.mxu0 0.0
  %257 = vmatprep.subr.mxu0 0.0
  %258 = vmatpush1.msra.mxu0 0.0
  %259 = vmatprep.subr.mxu0 0.0
  %260 = vmatpush1.msra.mxu0 0.0
  %261 = vmatprep.subr.mxu0 0.0
  %262 = vmatpush1.msra.mxu0 0.0
  %263 = vmatprep.subr.mxu0 0.0
  %264 = vmatpush1.msra.mxu0 0.0
  %265 = vmatprep.subr.mxu0 0.0
  %266 = vmatpush1.msra.mxu0 0.0
  %267 = vmatprep.subr.mxu0 0.0
  %268 = vmatpush1.msra.mxu0 0.0
  %269 = vmatprep.subr.mxu0 0.0
  %270 = vmatpush1.msra.mxu0 0.0
  %271 = vmatprep.subr.mxu0 0.0
  %272 = vmatpush1.msra.mxu0 0.0
  %273 = vmatprep.subr.mxu0 0.0
  %274 = vmatpush1.msra.mxu0 0.0
  %275 = vmatprep.subr.mxu0 0.0
  %276 = vmatpush1.msra.mxu0 0.0
  %277 = vmatprep.subr.mxu0 0.0
  %278 = vmatpush1.msra.mxu0 0.0
  %279 = vmatprep.subr.mxu0 0.0
  %280 = vmatpush1.msra.mxu0 0.0
  %281 = vmatprep.subr.mxu0 0.0
  %282 = vmatpush1.msra.mxu0 0.0
  %283 = vmatprep.subr.mxu0 0.0
  %284 = vmatpush1.msra.mxu0 0.0
  %285 = vmatprep.subr.mxu0 0.0
  %286 = vmatpush1.msra.mxu0 0.0
  %287 = vmatprep.subr.mxu0 0.0
  %288 = vmatpush1.msra.mxu0 0.0
  %289 = vmatprep.subr.mxu0 0.0
  %290 = vmatpush1.msra.mxu0 0.0
  %291 = vmatprep.subr.mxu0 0.0
  %292 = vmatpush1.msra.mxu0 0.0
  %293 = vmatprep.subr.mxu0 0.0
  %294 = vmatpush1.msra.mxu0 0.0
  %295 = vmatprep.subr.mxu0 0.0
  %296 = vmatpush1.msra.mxu0 0.0
  %297 = vmatprep.subr.mxu0 0.0
  %298 = vmatpush1.msra.mxu0 0.0
  %299 = vmatprep.subr.mxu0 0.0
  %300 = vmatpush1.msra.mxu0 0.0
  %301 = vmatprep.mubr.f32.mxu0 0.0
  %302 = vmatmul.mubr.f32.gmra.mrb[0].mxu0 %v31
  %v303 = vpop.f32.mrb[0].mxu0
  %v304 = vadd.f32 0.0, %v303
  %v305 = vpop.f32.mrb[0].mxu0
  %306 = vmatprep.mubr.f32.mxu0 0.0
  %307 = vmatmul.mubr.f32.gmra.mrb[0].mxu0 %v34
  %v308 = vpop.f32.mrb[0].mxu0
  %v309 = vadd.f32 0.0, %v308
  %v310 = vpop.f32.mrb[0].mxu0
  %311 = vdwg.mxu0
  %314 = vrot.lane.b32.xlu0 %v304, 64
  %v315 = vpop.permute.xlu0 %314
  %316 = vrot.lane.b32.xlu0 %v309, 64
  %v317 = vpop.permute.xlu0 %316
  %vm320 = vcmask 785920
  %321 = vst.msk [vmem:[#allocation2] sm:$0xff] %vm320, %v315
  %322 = vst.msk [vmem:[#allocation2 + $0x8] sm:$0xff] %vm320, %v317
  %v323 = vld [vmem:[%s0] sm:$0xff]
  %v324 = vld [vmem:[%s0 + $0x8] sm:$0xff]
  %v325 = vld [vmem:[#allocation2] sm:$0xff]
  %v326 = vld [vmem:[#allocation2 + $0x8] sm:$0xff]
  %v327 = vld [vmem:[%s6] sm:$0x1]
  %v329 = vlaneseq
  %v330 = vshrl.u32 %v329, 7
  %v331 = vsub.s32 0, %v330
  %v332 = vrot.slane %v327, %v331
  %vm334 = vcmask 130048
  %v336 = vsel %vm334, %v323, 0
  %v339 = vsel %vm334, %v324, 0
  %341 = vmatprep.subr.mxu0 0.0
  %342 = vmatpush1.msra.mxu0 %v325
  %343 = vmatprep.subr.mxu0 0.0
  %344 = vmatpush1.msra.mxu0 %v326
  %345 = vmatprep.subr.mxu0 0.0
  %346 = vmatpush1.msra.mxu0 0.0
  %347 = vmatprep.subr.mxu0 0.0
  %348 = vmatpush1.msra.mxu0 0.0
  %349 = vmatprep.subr.mxu0 0.0
  %350 = vmatpush1.msra.mxu0 0.0
  %351 = vmatprep.subr.mxu0 0.0
  %352 = vmatpush1.msra.mxu0 0.0
  %353 = vmatprep.subr.mxu0 0.0
  %354 = vmatpush1.msra.mxu0 0.0
  %355 = vmatprep.subr.mxu0 0.0
  %356 = vmatpush1.msra.mxu0 0.0
  %357 = vmatprep.subr.mxu0 0.0
  %358 = vmatpush1.msra.mxu0 0.0
  %359 = vmatprep.subr.mxu0 0.0
  %360 = vmatpush1.msra.mxu0 0.0
  %361 = vmatprep.subr.mxu0 0.0
  %362 = vmatpush1.msra.mxu0 0.0
  %363 = vmatprep.subr.mxu0 0.0
  %364 = vmatpush1.msra.mxu0 0.0
  %365 = vmatprep.subr.mxu0 0.0
  %366 = vmatpush1.msra.mxu0 0.0
  %367 = vmatprep.subr.mxu0 0.0
  %368 = vmatpush1.msra.mxu0 0.0
  %369 = vmatprep.subr.mxu0 0.0
  %370 = vmatpush1.msra.mxu0 0.0
  %371 = vmatprep.subr.mxu0 0.0
  %372 = vmatpush1.msra.mxu0 0.0
  %373 = vmatprep.subr.mxu0 0.0
  %374 = vmatpush1.msra.mxu0 0.0
  %375 = vmatprep.subr.mxu0 0.0
  %376 = vmatpush1.msra.mxu0 0.0
  %377 = vmatprep.subr.mxu0 0.0
  %378 = vmatpush1.msra.mxu0 0.0
  %379 = vmatprep.subr.mxu0 0.0
  %380 = vmatpush1.msra.mxu0 0.0
  %381 = vmatprep.subr.mxu0 0.0
  %382 = vmatpush1.msra.mxu0 0.0
  %383 = vmatprep.subr.mxu0 0.0
  %384 = vmatpush1.msra.mxu0 0.0
  %385 = vmatprep.subr.mxu0 0.0
  %386 = vmatpush1.msra.mxu0 0.0
  %387 = vmatprep.subr.mxu0 0.0
  %388 = vmatpush1.msra.mxu0 0.0
  %389 = vmatprep.subr.mxu0 0.0
  %390 = vmatpush1.msra.mxu0 0.0
  %391 = vmatprep.subr.mxu0 0.0
  %392 = vmatpush1.msra.mxu0 0.0
  %393 = vmatprep.subr.mxu0 0.0
  %394 = vmatpush1.msra.mxu0 0.0
  %395 = vmatprep.subr.mxu0 0.0
  %396 = vmatpush1.msra.mxu0 0.0
  %397 = vmatprep.subr.mxu0 0.0
  %398 = vmatpush1.msra.mxu0 0.0
  %399 = vmatprep.subr.mxu0 0.0
  %400 = vmatpush1.msra.mxu0 0.0
  %401 = vmatprep.subr.mxu0 0.0
  %402 = vmatpush1.msra.mxu0 0.0
  %403 = vmatprep.subr.mxu0 0.0
  %404 = vmatpush1.msra.mxu0 0.0
  %405 = vmatprep.mubr.f32.mxu0 0.0
  %406 = vmatmul.mubr.f32.gmra.mrb[0].mxu0 %v336
  %v407 = vpop.f32.mrb[0].mxu0
  %v408 = vadd.f32 %v332, %v407
  %v409 = vpop.f32.mrb[0].mxu0
  %410 = vmatprep.mubr.f32.mxu0 0.0
  %411 = vmatmul.mubr.f32.gmra.mrb[0].mxu0 %v339
  %v412 = vpop.f32.mrb[0].mxu0
  %v413 = vadd.f32 %v332, %v412
  %v414 = vpop.f32.mrb[0].mxu0
  %415 = vdwg.mxu0
  %vm416 = vcmask 785408
  %417 = vst.msk [vmem:[%s7] sm:$0xff] %vm416, %v408
  %418 = vst.msk [vmem:[%s7 + $0x8] sm:$0xff] %vm416, %v413
  // Predicated region
  $region30: #{graphcim_forward.5} parent=0 // pred_check
    _
  $region31: #{graphcim_forward.5} parent=0 // pred_check_branch
    %420 = sbr.rel (0) target = $region33
  $region32: #{graphcim_forward.5} parent=0 // pred_region
    _
  $region33: #{graphcim_forward.5} parent=0 // pred_fallthru
    _
  // Predicated region
  $region34: #{graphcim_forward.5} parent=0 // pred_check
    _
  $region35: #{graphcim_forward.5} parent=0 // pred_check_branch
    %422 = sbr.rel (0) target = $region37
  $region36: #{graphcim_forward.5} parent=0 // pred_region
    _
  $region37: #{graphcim_forward.5} parent=0 // pred_fallthru
    _

// kernel: graphcim_forward.7
$region0: #{graphcim_forward.7}
  #allocation0 [shape = 'u32[]', space=smem, size = 0x4, offset = 0x4, fixed_abs, tag = 'smem constant byte address 0x4 - core index']
  #allocation1 [shape = 'u32[144,128]{1,0:T(1,128)}', space=vmem, size = 0x12000, scoped, tag = 'internal scratch']
  %s0 = inlined_call_operand.vmem [shape: f32[16,16], index: 0, kind: input, shape index: {}]
  %s1 = inlined_call_operand.vmem [shape: f32[16,8], index: 1, kind: input, shape index: {}]
  %s2 = inlined_call_operand.vmem [shape: f32[16,32], index: 2, kind: input, shape index: {}]
  %s3 = inlined_call_operand.vmem [shape: f32[8,32], index: 3, kind: input, shape index: {}]
  %s4 = inlined_call_operand.vmem [shape: f32[32,8], index: 4, kind: input, shape index: {}]
  %s5 = inlined_call_operand.vmem [shape: f32[32,8], index: 5, kind: input, shape index: {}]
  %s6 = inlined_call_operand.vmem [shape: f32[1,8], index: 6, kind: input, shape index: {}]
  %s7 = inlined_call_operand.vmem [shape: f32[16,24], index: 7, kind: output, shape index: {}]
  %s8 = sld [smem:[#allocation0]]
  $region38: #{graphcim_forward.7} parent=0
    _
  %s10 = ssub.s32 1, %s8
  %s11 = scalar_select 0, %s10, %s8
  // Predicated region
  $region2: #{graphcim_forward.7} parent=0 // pred_check
    _
  $region3: #{graphcim_forward.7} parent=0 // pred_check_branch
    %13 = sbr.rel (0) target = $region5
  $region4: #{graphcim_forward.7} parent=0 // pred_region
    _
  $region5: #{graphcim_forward.7} parent=0 // pred_fallthru
    _
  // Predicated region
  $region6: #{graphcim_forward.7} parent=0 // pred_check
    _
  $region7: #{graphcim_forward.7} parent=0 // pred_check_branch
    %15 = sbr.rel (0) target = $region9
  $region8: #{graphcim_forward.7} parent=0 // pred_region
    _
  $region9: #{graphcim_forward.7} parent=0 // pred_fallthru
    _
  // Predicated region
  $region10: #{graphcim_forward.7} parent=0 // pred_check
    _
  $region11: #{graphcim_forward.7} parent=0 // pred_check_branch
    %17 = sbr.rel (0) target = $region13
  $region12: #{graphcim_forward.7} parent=0 // pred_region
    _
  $region13: #{graphcim_forward.7} parent=0 // pred_fallthru
    _
  // Predicated region
  $region14: #{graphcim_forward.7} parent=0 // pred_check
    _
  $region15: #{graphcim_forward.7} parent=0 // pred_check_branch
    %19 = sbr.rel (0) target = $region17
  $region16: #{graphcim_forward.7} parent=0 // pred_region
    _
  $region17: #{graphcim_forward.7} parent=0 // pred_fallthru
    _
  // Predicated region
  $region18: #{graphcim_forward.7} parent=0 // pred_check
    _
  $region19: #{graphcim_forward.7} parent=0 // pred_check_branch
    %21 = sbr.rel (0) target = $region21
  $region20: #{graphcim_forward.7} parent=0 // pred_region
    _
  $region21: #{graphcim_forward.7} parent=0 // pred_fallthru
    _
  // Predicated region
  $region22: #{graphcim_forward.7} parent=0 // pred_check
    _
  $region23: #{graphcim_forward.7} parent=0 // pred_check_branch
    %23 = sbr.rel (0) target = $region25
  $region24: #{graphcim_forward.7} parent=0 // pred_region
    _
  $region25: #{graphcim_forward.7} parent=0 // pred_fallthru
    _
  // Predicated region
  $region26: #{graphcim_forward.7} parent=0 // pred_check
    _
  $region27: #{graphcim_forward.7} parent=0 // pred_check_branch
    %25 = sbr.rel (0) target = $region29
  $region28: #{graphcim_forward.7} parent=0 // pred_region
    _
  $region29: #{graphcim_forward.7} parent=0 // pred_fallthru
    _
  %v26 = vld [vmem:[%s1] sm:$0xff]
  %v27 = vld [vmem:[%s1 + $0x8] sm:$0xff]
  %v28 = vand.u32 2147483647, %v26
  %v29 = vand.u32 2147483647, %v27
  %vm30 = vcmask 64512
  %v31 = vsel %vm30, %v28, 0.0
  %32 = vadd.xlane.f32.xlu0 %v31
  %v33 = vpop.xlane.xlu0 %32
  %v34 = vsel %vm30, %v29, 0.0
  %35 = vadd.xlane.f32.xlu0 %v34
  %v36 = vpop.xlane.xlu0 %35
  %v37 = vmax.f32 %v33, 1e-12
  %v38 = vmax.f32 %v36, 1e-12
  %v39 = vrcp.pop %v37
  %v40 = vmul.f32 %v26, %v39
  %v41 = vrcp.pop %v38
  %v42 = vmul.f32 %v27, %v41
  %v43 = vld [vmem:[%s2] sm:$0xff]
  %v44 = vld [vmem:[%s2 + $0x8] sm:$0xff]
  %v45 = vld [vmem:[%s3] sm:$0xff]
  %vm46 = vcmask 261120
  %v48 = vsel %vm46, %v43, 0
  %v51 = vsel %vm46, %v44, 0
  %53 = vmatprep.subr.mxu0 0.0
  %54 = vmatpush1.xpose.msra.mxu0 %v48
  %55 = vmatprep.subr.mxu0 0.0
  %56 = vmatpush1.xpose.msra.mxu0 %v51
  %57 = vmatprep.subr.mxu0 0.0
  %58 = vmatpush1.xpose.msra.mxu0 0.0
  %59 = vmatprep.subr.mxu0 0.0
  %60 = vmatpush1.xpose.msra.mxu0 0.0
  %61 = vmatprep.subr.mxu0 0.0
  %62 = vmatpush1.xpose.msra.mxu0 0.0
  %63 = vmatprep.subr.mxu0 0.0
  %64 = vmatpush1.xpose.msra.mxu0 0.0
  %65 = vmatprep.subr.mxu0 0.0
  %66 = vmatpush1.xpose.msra.mxu0 0.0
  %67 = vmatprep.subr.mxu0 0.0
  %68 = vmatpush1.xpose.msra.mxu0 0.0
  %69 = vmatprep.subr.mxu0 0.0
  %70 = vmatpush1.xpose.msra.mxu0 0.0
  %71 = vmatprep.subr.mxu0 0.0
  %72 = vmatpush1.xpose.msra.mxu0 0.0
  %73 = vmatprep.subr.mxu0 0.0
  %74 = vmatpush1.xpose.msra.mxu0 0.0
  %75 = vmatprep.subr.mxu0 0.0
  %76 = vmatpush1.xpose.msra.mxu0 0.0
  %77 = vmatprep.subr.mxu0 0.0
  %78 = vmatpush1.xpose.msra.mxu0 0.0
  %79 = vmatprep.subr.mxu0 0.0
  %80 = vmatpush1.xpose.msra.mxu0 0.0
  %81 = vmatprep.subr.mxu0 0.0
  %82 = vmatpush1.xpose.msra.mxu0 0.0
  %83 = vmatprep.subr.mxu0 0.0
  %84 = vmatpush1.xpose.msra.mxu0 0.0
  %85 = vmatprep.subr.mxu0 0.0
  %86 = vmatpush1.xpose.msra.mxu0 0.0
  %87 = vmatprep.subr.mxu0 0.0
  %88 = vmatpush1.xpose.msra.mxu0 0.0
  %89 = vmatprep.subr.mxu0 0.0
  %90 = vmatpush1.xpose.msra.mxu0 0.0
  %91 = vmatprep.subr.mxu0 0.0
  %92 = vmatpush1.xpose.msra.mxu0 0.0
  %93 = vmatprep.subr.mxu0 0.0
  %94 = vmatpush1.xpose.msra.mxu0 0.0
  %95 = vmatprep.subr.mxu0 0.0
  %96 = vmatpush1.xpose.msra.mxu0 0.0
  %97 = vmatprep.subr.mxu0 0.0
  %98 = vmatpush1.xpose.msra.mxu0 0.0
  %99 = vmatprep.subr.mxu0 0.0
  %100 = vmatpush1.xpose.msra.mxu0 0.0
  %101 = vmatprep.subr.mxu0 0.0
  %102 = vmatpush1.xpose.msra.mxu0 0.0
  %103 = vmatprep.subr.mxu0 0.0
  %104 = vmatpush1.xpose.msra.mxu0 0.0
  %105 = vmatprep.subr.mxu0 0.0
  %106 = vmatpush1.xpose.msra.mxu0 0.0
  %107 = vmatprep.subr.mxu0 0.0
  %108 = vmatpush1.xpose.msra.mxu0 0.0
  %109 = vmatprep.subr.mxu0 0.0
  %110 = vmatpush1.xpose.msra.mxu0 0.0
  %111 = vmatprep.subr.mxu0 0.0
  %112 = vmatpush1.xpose.msra.mxu0 0.0
  %113 = vmatprep.subr.mxu0 0.0
  %114 = vmatpush1.xpose.msra.mxu0 0.0
  %115 = vmatprep.subr.mxu0 0.0
  %116 = vmatpush1.xpose.msra.mxu0 0.0
  %117 = vmatprep.mubr.f32.mxu0 0.0
  %118 = vmatmul.mubr.f32.gmra.mrb[0].mxu0 %v48
  %v119 = vpop.f32.mrb[0].mxu0
  %v120 = vadd.f32 0.0, %v119
  %v121 = vpop.f32.mrb[0].mxu0
  %122 = vmatprep.mubr.f32.mxu0 0.0
  %123 = vmatmul.mubr.f32.gmra.mrb[0].mxu0 %v51
  %v124 = vpop.f32.mrb[0].mxu0
  %v125 = vadd.f32 0.0, %v124
  %v126 = vpop.f32.mrb[0].mxu0
  %127 = vdwg.mxu0
  %v129 = vsel %vm30, %v40, 0
  %v132 = vsel %vm30, %v42, 0
  %134 = vmatprep.subr.mxu0 0.0
  %135 = vmatpush1.msra.mxu0 %v45
  %136 = vmatprep.subr.mxu0 0.0
  %137 = vmatpush1.msra.mxu0 0.0
  %138 = vmatprep.subr.mxu0 0.0
  %139 = vmatpush1.msra.mxu0 0.0
  %140 = vmatprep.subr.mxu0 0.0
  %141 = vmatpush1.msra.mxu0 0.0
  %142 = vmatprep.subr.mxu0 0.0
  %143 = vmatpush1.msra.mxu0 0.0
  %144 = vmatprep.subr.mxu0 0.0
  %145 = vmatpush1.msra.mxu0 0.0
  %146 = vmatprep.subr.mxu0 0.0
  %147 = vmatpush1.msra.mxu0 0.0
  %148 = vmatprep.subr.mxu0 0.0
  %149 = vmatpush1.msra.mxu0 0.0
  %150 = vmatprep.subr.mxu0 0.0
  %151 = vmatpush1.msra.mxu0 0.0
  %152 = vmatprep.subr.mxu0 0.0
  %153 = vmatpush1.msra.mxu0 0.0
  %154 = vmatprep.subr.mxu0 0.0
  %155 = vmatpush1.msra.mxu0 0.0
  %156 = vmatprep.subr.mxu0 0.0
  %157 = vmatpush1.msra.mxu0 0.0
  %158 = vmatprep.subr.mxu0 0.0
  %159 = vmatpush1.msra.mxu0 0.0
  %160 = vmatprep.subr.mxu0 0.0
  %161 = vmatpush1.msra.mxu0 0.0
  %162 = vmatprep.subr.mxu0 0.0
  %163 = vmatpush1.msra.mxu0 0.0
  %164 = vmatprep.subr.mxu0 0.0
  %165 = vmatpush1.msra.mxu0 0.0
  %166 = vmatprep.subr.mxu0 0.0
  %167 = vmatpush1.msra.mxu0 0.0
  %168 = vmatprep.subr.mxu0 0.0
  %169 = vmatpush1.msra.mxu0 0.0
  %170 = vmatprep.subr.mxu0 0.0
  %171 = vmatpush1.msra.mxu0 0.0
  %172 = vmatprep.subr.mxu0 0.0
  %173 = vmatpush1.msra.mxu0 0.0
  %174 = vmatprep.subr.mxu0 0.0
  %175 = vmatpush1.msra.mxu0 0.0
  %176 = vmatprep.subr.mxu0 0.0
  %177 = vmatpush1.msra.mxu0 0.0
  %178 = vmatprep.subr.mxu0 0.0
  %179 = vmatpush1.msra.mxu0 0.0
  %180 = vmatprep.subr.mxu0 0.0
  %181 = vmatpush1.msra.mxu0 0.0
  %182 = vmatprep.subr.mxu0 0.0
  %183 = vmatpush1.msra.mxu0 0.0
  %184 = vmatprep.subr.mxu0 0.0
  %185 = vmatpush1.msra.mxu0 0.0
  %186 = vmatprep.subr.mxu0 0.0
  %187 = vmatpush1.msra.mxu0 0.0
  %188 = vmatprep.subr.mxu0 0.0
  %189 = vmatpush1.msra.mxu0 0.0
  %190 = vmatprep.subr.mxu0 0.0
  %191 = vmatpush1.msra.mxu0 0.0
  %192 = vmatprep.subr.mxu0 0.0
  %193 = vmatpush1.msra.mxu0 0.0
  %194 = vmatprep.subr.mxu0 0.0
  %195 = vmatpush1.msra.mxu0 0.0
  %196 = vmatprep.subr.mxu0 0.0
  %197 = vmatpush1.msra.mxu0 0.0
  %198 = vmatprep.mubr.f32.mxu0 0.0
  %199 = vmatmul.mubr.f32.gmra.mrb[0].mxu0 %v129
  %v200 = vpop.f32.mrb[0].mxu0
  %v201 = vadd.f32 0.0, %v200
  %v202 = vpop.f32.mrb[0].mxu0
  %203 = vmatprep.mubr.f32.mxu0 0.0
  %204 = vmatmul.mubr.f32.gmra.mrb[0].mxu0 %v132
  %v205 = vpop.f32.mrb[0].mxu0
  %v206 = vadd.f32 0.0, %v205
  %v207 = vpop.f32.mrb[0].mxu0
  %208 = vdwg.mxu0
  %v209 = vld [vmem:[%s4] sm:$0xff]
  %v210 = vld [vmem:[%s4 + $0x8] sm:$0xff]
  %v211 = vld [vmem:[%s4 + $0x10] sm:$0xff]
  %v212 = vld [vmem:[%s4 + $0x18] sm:$0xff]
  %v213 = vld [vmem:[%s5] sm:$0xff]
  %v214 = vld [vmem:[%s5 + $0x8] sm:$0xff]
  %v215 = vld [vmem:[%s5 + $0x10] sm:$0xff]
  %v216 = vld [vmem:[%s5 + $0x18] sm:$0xff]
  %v218 = vsel %vm46, %v201, 0
  %v221 = vsel %vm46, %v206, 0
  %223 = vmatprep.subr.mxu0 0.0
  %224 = vmatpush1.msra.mxu0 %v213
  %225 = vmatprep.subr.mxu0 0.0
  %226 = vmatpush1.msra.mxu0 %v214
  %227 = vmatprep.subr.mxu0 0.0
  %228 = vmatpush1.msra.mxu0 %v215
  %229 = vmatprep.subr.mxu0 0.0
  %230 = vmatpush1.msra.mxu0 %v216
  %231 = vmatprep.subr.mxu0 0.0
  %232 = vmatpush1.msra.mxu0 0.0
  %233 = vmatprep.subr.mxu0 0.0
  %234 = vmatpush1.msra.mxu0 0.0
  %235 = vmatprep.subr.mxu0 0.0
  %236 = vmatpush1.msra.mxu0 0.0
  %237 = vmatprep.subr.mxu0 0.0
  %238 = vmatpush1.msra.mxu0 0.0
  %239 = vmatprep.subr.mxu0 0.0
  %240 = vmatpush1.msra.mxu0 0.0
  %241 = vmatprep.subr.mxu0 0.0
  %242 = vmatpush1.msra.mxu0 0.0
  %243 = vmatprep.subr.mxu0 0.0
  %244 = vmatpush1.msra.mxu0 0.0
  %245 = vmatprep.subr.mxu0 0.0
  %246 = vmatpush1.msra.mxu0 0.0
  %247 = vmatprep.subr.mxu0 0.0
  %248 = vmatpush1.msra.mxu0 0.0
  %249 = vmatprep.subr.mxu0 0.0
  %250 = vmatpush1.msra.mxu0 0.0
  %251 = vmatprep.subr.mxu0 0.0
  %252 = vmatpush1.msra.mxu0 0.0
  %253 = vmatprep.subr.mxu0 0.0
  %254 = vmatpush1.msra.mxu0 0.0
  %255 = vmatprep.subr.mxu0 0.0
  %256 = vmatpush1.msra.mxu0 0.0
  %257 = vmatprep.subr.mxu0 0.0
  %258 = vmatpush1.msra.mxu0 0.0
  %259 = vmatprep.subr.mxu0 0.0
  %260 = vmatpush1.msra.mxu0 0.0
  %261 = vmatprep.subr.mxu0 0.0
  %262 = vmatpush1.msra.mxu0 0.0
  %263 = vmatprep.subr.mxu0 0.0
  %264 = vmatpush1.msra.mxu0 0.0
  %265 = vmatprep.subr.mxu0 0.0
  %266 = vmatpush1.msra.mxu0 0.0
  %267 = vmatprep.subr.mxu0 0.0
  %268 = vmatpush1.msra.mxu0 0.0
  %269 = vmatprep.subr.mxu0 0.0
  %270 = vmatpush1.msra.mxu0 0.0
  %271 = vmatprep.subr.mxu0 0.0
  %272 = vmatpush1.msra.mxu0 0.0
  %273 = vmatprep.subr.mxu0 0.0
  %274 = vmatpush1.msra.mxu0 0.0
  %275 = vmatprep.subr.mxu0 0.0
  %276 = vmatpush1.msra.mxu0 0.0
  %277 = vmatprep.subr.mxu0 0.0
  %278 = vmatpush1.msra.mxu0 0.0
  %279 = vmatprep.subr.mxu0 0.0
  %280 = vmatpush1.msra.mxu0 0.0
  %281 = vmatprep.subr.mxu0 0.0
  %282 = vmatpush1.msra.mxu0 0.0
  %283 = vmatprep.subr.mxu0 0.0
  %284 = vmatpush1.msra.mxu0 0.0
  %285 = vmatprep.subr.mxu0 0.0
  %286 = vmatpush1.msra.mxu0 0.0
  %287 = vmatprep.mubr.f32.mxu0 0.0
  %288 = vmatmul.mubr.f32.gmra.mrb[0].mxu0 %v218
  %v289 = vpop.f32.mrb[0].mxu0
  %v290 = vadd.f32 0.0, %v289
  %v291 = vpop.f32.mrb[0].mxu0
  %292 = vmatprep.mubr.f32.mxu0 0.0
  %293 = vmatmul.mubr.f32.gmra.mrb[0].mxu0 %v221
  %v294 = vpop.f32.mrb[0].mxu0
  %v295 = vadd.f32 0.0, %v294
  %v296 = vpop.f32.mrb[0].mxu0
  %297 = vdwg.mxu0
  %298 = vmatprep.subr.mxu0 0.0
  %299 = vmatpush1.msra.mxu0 %v209
  %300 = vmatprep.subr.mxu0 0.0
  %301 = vmatpush1.msra.mxu0 %v210
  %302 = vmatprep.subr.mxu0 0.0
  %303 = vmatpush1.msra.mxu0 %v211
  %304 = vmatprep.subr.mxu0 0.0
  %305 = vmatpush1.msra.mxu0 %v212
  %306 = vmatprep.subr.mxu0 0.0
  %307 = vmatpush1.msra.mxu0 0.0
  %308 = vmatprep.subr.mxu0 0.0
  %309 = vmatpush1.msra.mxu0 0.0
  %310 = vmatprep.subr.mxu0 0.0
  %311 = vmatpush1.msra.mxu0 0.0
  %312 = vmatprep.subr.mxu0 0.0
  %313 = vmatpush1.msra.mxu0 0.0
  %314 = vmatprep.subr.mxu0 0.0
  %315 = vmatpush1.msra.mxu0 0.0
  %316 = vmatprep.subr.mxu0 0.0
  %317 = vmatpush1.msra.mxu0 0.0
  %318 = vmatprep.subr.mxu0 0.0
  %319 = vmatpush1.msra.mxu0 0.0
  %320 = vmatprep.subr.mxu0 0.0
  %321 = vmatpush1.msra.mxu0 0.0
  %322 = vmatprep.subr.mxu0 0.0
  %323 = vmatpush1.msra.mxu0 0.0
  %324 = vmatprep.subr.mxu0 0.0
  %325 = vmatpush1.msra.mxu0 0.0
  %326 = vmatprep.subr.mxu0 0.0
  %327 = vmatpush1.msra.mxu0 0.0
  %328 = vmatprep.subr.mxu0 0.0
  %329 = vmatpush1.msra.mxu0 0.0
  %330 = vmatprep.subr.mxu0 0.0
  %331 = vmatpush1.msra.mxu0 0.0
  %332 = vmatprep.subr.mxu0 0.0
  %333 = vmatpush1.msra.mxu0 0.0
  %334 = vmatprep.subr.mxu0 0.0
  %335 = vmatpush1.msra.mxu0 0.0
  %336 = vmatprep.subr.mxu0 0.0
  %337 = vmatpush1.msra.mxu0 0.0
  %338 = vmatprep.subr.mxu0 0.0
  %339 = vmatpush1.msra.mxu0 0.0
  %340 = vmatprep.subr.mxu0 0.0
  %341 = vmatpush1.msra.mxu0 0.0
  %342 = vmatprep.subr.mxu0 0.0
  %343 = vmatpush1.msra.mxu0 0.0
  %344 = vmatprep.subr.mxu0 0.0
  %345 = vmatpush1.msra.mxu0 0.0
  %346 = vmatprep.subr.mxu0 0.0
  %347 = vmatpush1.msra.mxu0 0.0
  %348 = vmatprep.subr.mxu0 0.0
  %349 = vmatpush1.msra.mxu0 0.0
  %350 = vmatprep.subr.mxu0 0.0
  %351 = vmatpush1.msra.mxu0 0.0
  %352 = vmatprep.subr.mxu0 0.0
  %353 = vmatpush1.msra.mxu0 0.0
  %354 = vmatprep.subr.mxu0 0.0
  %355 = vmatpush1.msra.mxu0 0.0
  %356 = vmatprep.subr.mxu0 0.0
  %357 = vmatpush1.msra.mxu0 0.0
  %358 = vmatprep.subr.mxu0 0.0
  %359 = vmatpush1.msra.mxu0 0.0
  %360 = vmatprep.subr.mxu0 0.0
  %361 = vmatpush1.msra.mxu0 0.0
  %362 = vmatprep.mubr.f32.mxu0 0.0
  %363 = vmatmul.mubr.f32.gmra.mrb[0].mxu0 %v48
  %v364 = vpop.f32.mrb[0].mxu0
  %v365 = vadd.f32 %v290, %v364
  %v366 = vpop.f32.mrb[0].mxu0
  %367 = vmatprep.mubr.f32.mxu0 0.0
  %368 = vmatmul.mubr.f32.gmra.mrb[0].mxu0 %v51
  %v369 = vpop.f32.mrb[0].mxu0
  %v370 = vadd.f32 %v295, %v369
  %v371 = vpop.f32.mrb[0].mxu0
  %372 = vdwg.mxu0
  %v373 = vld [vmem:[%s0] sm:$0xff]
  %v374 = vld [vmem:[%s0 + $0x8] sm:$0xff]
  %v375 = vld [vmem:[%s6] sm:$0x1]
  %v377 = vlaneseq
  %v378 = vshrl.u32 %v377, 7
  %v379 = vsub.s32 0, %v378
  %v380 = vrot.slane %v375, %v379
  %vm382 = vcmask 130048
  %v384 = vsel %vm382, %v373, 0
  %v387 = vsel %vm382, %v374, 0
  %389 = vmatprep.subr.mxu0 0.0
  %390 = vmatpush1.msra.mxu0 %v365
  %391 = vmatprep.subr.mxu0 0.0
  %392 = vmatpush1.msra.mxu0 %v370
  %393 = vmatprep.subr.mxu0 0.0
  %394 = vmatpush1.msra.mxu0 0.0
  %395 = vmatprep.subr.mxu0 0.0
  %396 = vmatpush1.msra.mxu0 0.0
  %397 = vmatprep.subr.mxu0 0.0
  %398 = vmatpush1.msra.mxu0 0.0
  %399 = vmatprep.subr.mxu0 0.0
  %400 = vmatpush1.msra.mxu0 0.0
  %401 = vmatprep.subr.mxu0 0.0
  %402 = vmatpush1.msra.mxu0 0.0
  %403 = vmatprep.subr.mxu0 0.0
  %404 = vmatpush1.msra.mxu0 0.0
  %405 = vmatprep.subr.mxu0 0.0
  %406 = vmatpush1.msra.mxu0 0.0
  %407 = vmatprep.subr.mxu0 0.0
  %408 = vmatpush1.msra.mxu0 0.0
  %409 = vmatprep.subr.mxu0 0.0
  %410 = vmatpush1.msra.mxu0 0.0
  %411 = vmatprep.subr.mxu0 0.0
  %412 = vmatpush1.msra.mxu0 0.0
  %413 = vmatprep.subr.mxu0 0.0
  %414 = vmatpush1.msra.mxu0 0.0
  %415 = vmatprep.subr.mxu0 0.0
  %416 = vmatpush1.msra.mxu0 0.0
  %417 = vmatprep.subr.mxu0 0.0
  %418 = vmatpush1.msra.mxu0 0.0
  %419 = vmatprep.subr.mxu0 0.0
  %420 = vmatpush1.msra.mxu0 0.0
  %421 = vmatprep.subr.mxu0 0.0
  %422 = vmatpush1.msra.mxu0 0.0
  %423 = vmatprep.subr.mxu0 0.0
  %424 = vmatpush1.msra.mxu0 0.0
  %425 = vmatprep.subr.mxu0 0.0
  %426 = vmatpush1.msra.mxu0 0.0
  %427 = vmatprep.subr.mxu0 0.0
  %428 = vmatpush1.msra.mxu0 0.0
  %429 = vmatprep.subr.mxu0 0.0
  %430 = vmatpush1.msra.mxu0 0.0
  %431 = vmatprep.subr.mxu0 0.0
  %432 = vmatpush1.msra.mxu0 0.0
  %433 = vmatprep.subr.mxu0 0.0
  %434 = vmatpush1.msra.mxu0 0.0
  %435 = vmatprep.subr.mxu0 0.0
  %436 = vmatpush1.msra.mxu0 0.0
  %437 = vmatprep.subr.mxu0 0.0
  %438 = vmatpush1.msra.mxu0 0.0
  %439 = vmatprep.subr.mxu0 0.0
  %440 = vmatpush1.msra.mxu0 0.0
  %441 = vmatprep.subr.mxu0 0.0
  %442 = vmatpush1.msra.mxu0 0.0
  %443 = vmatprep.subr.mxu0 0.0
  %444 = vmatpush1.msra.mxu0 0.0
  %445 = vmatprep.subr.mxu0 0.0
  %446 = vmatpush1.msra.mxu0 0.0
  %447 = vmatprep.subr.mxu0 0.0
  %448 = vmatpush1.msra.mxu0 0.0
  %449 = vmatprep.subr.mxu0 0.0
  %450 = vmatpush1.msra.mxu0 0.0
  %451 = vmatprep.subr.mxu0 0.0
  %452 = vmatpush1.msra.mxu0 0.0
  %453 = vmatprep.mubr.f32.mxu0 0.0
  %454 = vmatmul.mubr.f32.gmra.mrb[0].mxu0 %v384
  %v455 = vpop.f32.mrb[0].mxu0
  %v456 = vadd.f32 %v380, %v455
  %v457 = vpop.f32.mrb[0].mxu0
  %458 = vmatprep.mubr.f32.mxu0 0.0
  %459 = vmatmul.mubr.f32.gmra.mrb[0].mxu0 %v387
  %v460 = vpop.f32.mrb[0].mxu0
  %v461 = vadd.f32 %v380, %v460
  %v462 = vpop.f32.mrb[0].mxu0
  %463 = vdwg.mxu0
  %464 = vst.msk [vmem:[%s7] sm:$0xff] %vm382, %v120
  %465 = vst.msk [vmem:[%s7 + $0x8] sm:$0xff] %vm382, %v125
  %468 = vrot.lane.b32.xlu0 %v456, 16
  %v469 = vpop.permute.xlu0 %468
  %470 = vrot.lane.b32.xlu0 %v461, 16
  %v471 = vpop.permute.xlu0 %470
  %vm474 = vcmask 195712
  %475 = vst.msk [vmem:[%s7] sm:$0xff] %vm474, %v469
  %476 = vst.msk [vmem:[%s7 + $0x8] sm:$0xff] %vm474, %v471
  // Predicated region
  $region30: #{graphcim_forward.7} parent=0 // pred_check
    _
  $region31: #{graphcim_forward.7} parent=0 // pred_check_branch
    %478 = sbr.rel (0) target = $region33
  $region32: #{graphcim_forward.7} parent=0 // pred_region
    _
  $region33: #{graphcim_forward.7} parent=0 // pred_fallthru
    _
  // Predicated region
  $region34: #{graphcim_forward.7} parent=0 // pred_check
    _
  $region35: #{graphcim_forward.7} parent=0 // pred_check_branch
    %480 = sbr.rel (0) target = $region37
  $region36: #{graphcim_forward.7} parent=0 // pred_region
    _
  $region37: #{graphcim_forward.7} parent=0 // pred_fallthru
    _

</llo_original>
